<compile_context>
chip_gen: v6e
topology: v6e:2x2x1
jax: 0.10.0
libtpu: 0.0.40
codegen_flags: <defaults>
</compile_context>

<pallas_src>
import numpy as np
import jax
import jax.numpy as jnp
from jax import lax
from jax.experimental import pallas as pl
from jax.experimental.pallas import tpu as pltpu

KSIZE = 7
PAD = (KSIZE - 1) // 2
CONV_CHUNK = 8   # batch rows per conv pass (bounds vreg pressure)


def _round_up(a, b):
    return (a + b - 1) // b * b


def _make_cbam_kernel(C, H, W, S0, Nb):
    HW = H * W

    def kernel(x_ref, fc1w_ref, b1_ref, fc2w_ref, b2_ref, conv_ref, o_ref, pad_ref):
        # ---------------- load + single f32 upcast ----------------
        x = x_ref[...]
        if x.dtype != jnp.float32:
            x = x.astype(jnp.float32)                        # (Nb, C, HW)

        # ---------------- Channel gate ----------------
        # One-pass pooling over the lane-dense HW axis.
        avg_p = jnp.mean(x, axis=-1)                         # (Nb, C)
        max_p = jnp.max(x, axis=-1)                          # (Nb, C)
        pools = jnp.concatenate([avg_p, max_p], axis=0)      # (2*Nb, C)

        # Shared MLP: h = relu(pools @ fc1_w.T + b1); att = h @ fc2_w.T + b2
        h = lax.dot_general(pools, fc1w_ref[...],
                            (((1,), (1,)), ((), ())),
                            preferred_element_type=jnp.float32)
        h = jnp.maximum(h + b1_ref[...], 0.0)                # (2*Nb, hid)
        att = lax.dot_general(h, fc2w_ref[...],
                              (((1,), (1,)), ((), ())),
                              preferred_element_type=jnp.float32)
        att = att + b2_ref[...]                              # (2*Nb, C)
        ch_att = jax.nn.sigmoid(att[:Nb] + att[Nb:])         # (Nb, C)

        # Channel-gated activations, kept lane dense (last dim = HW).
        x1 = x * ch_att[:, :, None]                          # (Nb, C, HW) f32

        # ---------------- Spatial gate ----------------
        # Compressed 2-channel map over the whole batch block.
        ch_mx = jnp.max(x1, axis=1)                          # (Nb, HW)
        ch_mn = jnp.mean(x1, axis=1)                         # (Nb, HW)

        # Zero only the halo columns each grid step; the interior is fully
        # overwritten below, so the zero-halo invariant always holds.
        pad_ref[:, :, pl.ds(0, S0)] = jnp.zeros((2, Nb, S0), jnp.float32)
        pad_ref[:, :, pl.ds(S0 + HW, S0)] = jnp.zeros((2, Nb, S0), jnp.float32)
        pad_ref[:, :, pl.ds(S0, HW)] = jnp.stack([ch_mx, ch_mn], axis=0)

        # Column-validity masks for the flat 7x7 conv (depend only on kx).
        col = lax.broadcasted_iota(jnp.int32, (1, HW), 1) % W
        col_masks = [(col + (kx - PAD) >= 0) & (col + (kx - PAD) < W)
                     for kx in range(KSIZE)]

        # Hoist all 98 taps + bias out of every loop (SMEM reads, once/step).
        taps = [[[conv_ref[c * KSIZE * KSIZE + ky * KSIZE + kx]
                  for kx in range(KSIZE)]
                 for ky in range(KSIZE)]
                for c in range(2)]
        conv_bias = conv_ref[2 * KSIZE * KSIZE]

        # 7x7 conv (2 -> 1 ch), batch-vectorized.  One band load per
        # (channel, ky) = 14 loads per chunk; the 7 kx shifts are taken
        # in-register.  Chunked over the batch block so the 7 accumulators
        # stay inside the vreg file.
        for cs in range(0, Nb, CONV_CHUNK):
            cn = min(CONV_CHUNK, Nb - cs)
            acc = [jnp.zeros((cn, HW), jnp.float32) for _ in range(KSIZE)]
            for c in range(2):
                for ky in range(KSIZE):
                    start = S0 + (ky - PAD) * W - PAD
                    band = pad_ref[c, pl.ds(cs, cn), pl.ds(start, HW + 2 * PAD)]
                    for kx in range(KSIZE):
                        acc[kx] = acc[kx] + taps[c][ky][kx] * band[:, kx:kx + HW]

            conv_out = jnp.full((cn, HW), conv_bias, jnp.float32)
            for kx in range(KSIZE):
                conv_out = conv_out + jnp.where(col_masks[kx], acc[kx], 0.0)

            sp_scale = jax.nn.sigmoid(conv_out)              # (cn, HW)
            x1_c = x1[cs:cs + cn]                            # (cn, C, HW)
            o_ref[pl.ds(cs, cn)] = (x1_c * sp_scale[:, None, :]).astype(o_ref.dtype)

    return kernel


def cbam_forward(x, fc1_w, fc1_b, fc2_w, fc2_b, conv_w, conv_b, block_n=None):
    """CBAM forward. x: (N, C, H, W) NCHW; params in PyTorch layouts."""
    N, C, H, W = x.shape
    HW = H * W
    hid = fc1_w.shape[0]

    # Lane-dense layout: last dim becomes H*W.
    x_flat = x.reshape(N, C, HW)

    # Kernel-side parameter layouts.
    fc1w = fc1_w.astype(jnp.float32)                          # (hid, C)
    fc2w = fc2_w.astype(jnp.float32)                          # (C, hid)
    b1 = fc1_b.reshape(1, hid).astype(jnp.float32)
    b2 = fc2_b.reshape(1, C).astype(jnp.float32)
    conv_params = jnp.concatenate(
        [conv_w.reshape(-1), conv_b.reshape(-1)]).astype(jnp.float32)   # (99,)

    # ----- VMEM-aware block sizing -----
    try:
        info = pltpu.get_tpu_info()
        vmem_cap = int(getattr(info, "vmem_capacity_bytes", 64 * 2 ** 20))
    except Exception:
        vmem_cap = 64 * 2 ** 20                # conservative fallback (v7x per-core)
    vmem_budget = (vmem_cap * 3) // 4          # ~48 MiB on v7x, ~96 MiB on v5e/v6e

    itemsize = x.dtype.itemsize
    elem = C * HW
    # Per batch element: 2x double-buffered input + 2x output blocks plus
    # ~2x block-sized f32 in-kernel temporaries (upcast copy and x1).
    per_elem_vmem = elem * (4 * itemsize + 8)

    if block_n is None:
        cap_vmem = max(1, (vmem_budget - (8 << 20)) // max(per_elem_vmem, 1))
        cap_bw = max(1, (8 << 20) // max(elem * itemsize, 1))   # ~8 MiB input/block
        block_n = max(1, min(N, cap_vmem, cap_bw, 256))
        # Dual-TensorCore chips (v7x: 64 MiB VMEM/core): keep >= 2 grid steps.
        if vmem_cap <= (80 << 20) and N >= 2:
            block_n = min(block_n, (N + 1) // 2)
        # Make it divide N (perf only; prime N degrades toward block_n=1).
        while N % block_n:
            block_n -= 1
    grid = (N // block_n,)

    # Flat zero-padded scratch for the 7x7 spatial conv.
    halo = PAD * W + PAD
    S0 = _round_up(halo, 128)                  # lane-aligned start of the interior
    pad_len = 2 * S0 + HW

    needed = (block_n * per_elem_vmem
              + 2 * block_n * pad_len * 4
              + 4 * (2 * hid * C + hid + C + 128)
              + (4 << 20))
    vmem_limit = int(min(vmem_budget, max(needed, 32 << 20)))

    kernel = _make_cbam_kernel(C, H, W, S0, block_n)

    out_flat = pl.pallas_call(
        kernel,
        out_shape=jax.ShapeDtypeStruct((N, C, HW), x.dtype),
        grid_spec=pltpu.PrefetchScalarGridSpec(
            num_scalar_prefetch=0,
            grid=grid,
            in_specs=[
                pl.BlockSpec((block_n, C, HW), lambda i: (i, 0, 0)),   # x
                pl.BlockSpec((hid, C), lambda i: (0, 0)),              # fc1.weight
                pl.BlockSpec((1, hid), lambda i: (0, 0)),              # fc1.bias
                pl.BlockSpec((C, hid), lambda i: (0, 0)),              # fc2.weight
                pl.BlockSpec((1, C), lambda i: (0, 0)),                # fc2.bias
                pl.BlockSpec(memory_space=pltpu.MemorySpace.SMEM),     # conv w+b
            ],
            out_specs=pl.BlockSpec((block_n, C, HW), lambda i: (i, 0, 0)),
            scratch_shapes=[pltpu.VMEM((2, block_n, pad_len), jnp.float32)],
        ),
        compiler_params=pltpu.CompilerParams(
            dimension_semantics=("parallel",),
            vmem_limit_bytes=vmem_limit,
        ),
    )(x_flat, fc1w, b1, fc2w, b2, conv_params)

    return out_flat.reshape(N, C, H, W)


def cbam_reference(x, fc1_w, fc1_b, fc2_w, fc2_b, conv_w, conv_b):
    """Pure-JAX reference matching the PyTorch module semantics."""
    avg = jnp.mean(x, axis=(2, 3))
    mx = jnp.max(x, axis=(2, 3))

    def mlp(v):
        h = jnp.maximum(v @ fc1_w.T + fc1_b, 0.0)
        return h @ fc2_w.T + fc2_b

    ch = jax.nn.sigmoid(mlp(avg) + mlp(mx))[:, :, None, None]
    x1 = x * ch
    comp = jnp.stack([jnp.max(x1, axis=1), jnp.mean(x1, axis=1)], axis=1)   # (N,2,H,W)
    conv = lax.conv_general_dilated(
        comp, conv_w, (1, 1), ((PAD, PAD), (PAD, PAD)),
        dimension_numbers=("NCHW", "OIHW", "NCHW"),
    ) + conv_b[None, :, None, None]
    return x1 * jax.nn.sigmoid(conv)


if __name__ == "__main__":
    N, C, H, W = 2, 32, 16, 16
    reduction = 16
    hid = C // reduction

    key = jax.random.PRNGKey(0)
    ks = jax.random.split(key, 7)
    x = jax.random.normal(ks[0], (N, C, H, W), jnp.float32)

    # Deterministic synthetic parameters (PyTorch shapes).
    fc1_w = jax.random.normal(ks[1], (hid, C), jnp.float32) * 0.1   # Linear(C, C//r).weight
    fc1_b = jax.random.normal(ks[2], (hid,), jnp.float32) * 0.1
    fc2_w = jax.random.normal(ks[3], (C, hid), jnp.float32) * 0.1   # Linear(C//r, C).weight
    fc2_b = jax.random.normal(ks[4], (C,), jnp.float32) * 0.1
    conv_w = jax.random.normal(ks[5], (1, 2, KSIZE, KSIZE), jnp.float32) * 0.1
    conv_b = jax.random.normal(ks[6], (1,), jnp.float32) * 0.1

    out = jax.block_until_ready(
        cbam_forward(x, fc1_w, fc1_b, fc2_w, fc2_b, conv_w, conv_b))

    ref = cbam_reference(x, fc1_w, fc1_b, fc2_w, fc2_b, conv_w, conv_b)
    np.testing.assert_allclose(np.asarray(out), np.asarray(ref), rtol=1e-4, atol=1e-4)
    print("KERNEL_OK")
</pallas_src>

<mosaic_0001>
module attributes {stable_mosaic.version = 11 : i64} {
  func.func @kernel(%arg0: i32, %arg1: memref<1x32x256xf32, #tpu.memory_space<vmem>>, %arg2: memref<2x32xf32, #tpu.memory_space<vmem>>, %arg3: memref<1x2xf32, #tpu.memory_space<vmem>>, %arg4: memref<32x2xf32, #tpu.memory_space<vmem>>, %arg5: memref<1x32xf32, #tpu.memory_space<vmem>>, %arg6: memref<99xf32, #tpu.memory_space<smem>>, %arg7: memref<1x32x256xf32, #tpu.memory_space<vmem>>, %arg8: memref<2x1x512xf32, #tpu.memory_space<vmem>>) attributes {dimension_semantics = [#tpu.dimension_semantics<parallel>], iteration_bounds = array<i64: 2>, scalar_prefetch = 0 : i64, scratch_operands = 1 : i64, tpu.core_type = #tpu.core_type<tc>, window_params = [{transform_indices = @transform_0, window_bounds = array<i64: 1, 32, 256>}, {pipeline_mode = #tpu.pipeline_mode<synchronous>, transform_indices = @transform_1, window_bounds = array<i64: 2, 32>}, {pipeline_mode = #tpu.pipeline_mode<synchronous>, transform_indices = @transform_2, window_bounds = array<i64: 1, 2>}, {pipeline_mode = #tpu.pipeline_mode<synchronous>, transform_indices = @transform_3, window_bounds = array<i64: 32, 2>}, {pipeline_mode = #tpu.pipeline_mode<synchronous>, transform_indices = @transform_4, window_bounds = array<i64: 1, 32>}, {transform_indices = @transform_5, window_bounds = array<i64: 99>}, {transform_indices = @transform_6, window_bounds = array<i64: 1, 32, 256>}]} {
    %c0 = arith.constant 0 : index
    %c0_0 = arith.constant 0 : index
    %c0_1 = arith.constant 0 : index
    %0 = vector.load %arg1[%c0, %c0_0, %c0_1] : memref<1x32x256xf32, #tpu.memory_space<vmem>>, vector<1x32x256xf32>
    %cst = arith.constant dense<0.000000e+00> : vector<1x32xf32>
    %1 = vector.multi_reduction <add>, %0, %cst [2] : vector<1x32x256xf32> to vector<1x32xf32>
    %cst_2 = arith.constant 2.560000e+02 : f32
    %2 = vector.broadcast %cst_2 : f32 to vector<1x32xf32>
    %3 = arith.divf %1, %2 : vector<1x32xf32>
    %cst_3 = arith.constant dense<0xFF800000> : vector<1x32xf32>
    %4 = vector.multi_reduction <maximumf>, %0, %cst_3 [2] : vector<1x32x256xf32> to vector<1x32xf32>
    %5 = tpu.concatenate %3, %4 in 0 : vector<1x32xf32>, vector<1x32xf32> -> vector<2x32xf32>
    %c0_4 = arith.constant 0 : index
    %c0_5 = arith.constant 0 : index
    %6 = vector.load %arg2[%c0_4, %c0_5] : memref<2x32xf32, #tpu.memory_space<vmem>>, vector<2x32xf32>
    %cst_6 = arith.constant dense<0.000000e+00> : vector<2x2xf32>
    %7 = tpu.matmul %5, %6, %cst_6 {dimension_numbers = #tpu.dot_dimension_numbers<[1], [1], [0], [0], [0, 0, 1, 0], [], []>} : vector<2x32xf32>, vector<2x32xf32>, vector<2x2xf32> -> vector<2x2xf32>
    %c0_7 = arith.constant 0 : index
    %c0_8 = arith.constant 0 : index
    %8 = vector.load %arg3[%c0_7, %c0_8] : memref<1x2xf32, #tpu.memory_space<vmem>>, vector<1x2xf32>
    %9 = vector.broadcast %8 : vector<1x2xf32> to vector<2x2xf32>
    %10 = arith.addf %7, %9 : vector<2x2xf32>
    %cst_9 = arith.constant 0.000000e+00 : f32
    %11 = vector.broadcast %cst_9 : f32 to vector<2x2xf32>
    %12 = arith.maximumf %10, %11 : vector<2x2xf32>
    %c0_10 = arith.constant 0 : index
    %c0_11 = arith.constant 0 : index
    %13 = vector.load %arg4[%c0_10, %c0_11] : memref<32x2xf32, #tpu.memory_space<vmem>>, vector<32x2xf32>
    %cst_12 = arith.constant dense<0.000000e+00> : vector<2x32xf32>
    %14 = tpu.matmul %12, %13, %cst_12 {dimension_numbers = #tpu.dot_dimension_numbers<[1], [1], [0], [0], [0, 0, 1, 0], [], []>} : vector<2x2xf32>, vector<32x2xf32>, vector<2x32xf32> -> vector<2x32xf32>
    %c0_13 = arith.constant 0 : index
    %c0_14 = arith.constant 0 : index
    %15 = vector.load %arg5[%c0_13, %c0_14] : memref<1x32xf32, #tpu.memory_space<vmem>>, vector<1x32xf32>
    %16 = vector.broadcast %15 : vector<1x32xf32> to vector<2x32xf32>
    %17 = arith.addf %14, %16 : vector<2x32xf32>
    %18 = vector.extract_strided_slice %17 {offsets = [0, 0], sizes = [1, 32], strides = [1, 1]} : vector<2x32xf32> to vector<1x32xf32>
    %19 = vector.extract_strided_slice %17 {offsets = [1, 0], sizes = [1, 32], strides = [1, 1]} : vector<2x32xf32> to vector<1x32xf32>
    %20 = arith.addf %18, %19 : vector<1x32xf32>
    %21 = arith.negf %20 : vector<1x32xf32>
    %22 = math.exp %21 : vector<1x32xf32>
    %cst_15 = arith.constant 1.000000e+00 : f32
    %23 = vector.broadcast %cst_15 : f32 to vector<1x32xf32>
    %24 = arith.addf %23, %22 : vector<1x32xf32>
    %25 = arith.divf %23, %24 : vector<1x32xf32>
    %26 = vector.shape_cast %25 : vector<1x32xf32> to vector<1x32x1xf32>
    %27 = vector.broadcast %26 : vector<1x32x1xf32> to vector<1x32x256xf32>
    %28 = arith.mulf %0, %27 : vector<1x32x256xf32>
    %cst_16 = arith.constant dense<0xFF800000> : vector<1x256xf32>
    %29 = vector.multi_reduction <maximumf>, %28, %cst_16 [1] : vector<1x32x256xf32> to vector<1x256xf32>
    %cst_17 = arith.constant dense<0.000000e+00> : vector<1x256xf32>
    %30 = vector.multi_reduction <add>, %28, %cst_17 [1] : vector<1x32x256xf32> to vector<1x256xf32>
    %cst_18 = arith.constant 3.200000e+01 : f32
    %31 = vector.broadcast %cst_18 : f32 to vector<1x256xf32>
    %32 = arith.divf %30, %31 : vector<1x256xf32>
    %cst_19 = arith.constant 0.000000e+00 : f32
    %33 = vector.broadcast %cst_19 : f32 to vector<2x1x128xf32>
    %c0_20 = arith.constant 0 : index
    %c0_21 = arith.constant 0 : index
    %c0_22 = arith.constant 0 : index
    %34 = vector.load %arg8[%c0_20, %c0_21, %c0_22] : memref<2x1x512xf32, #tpu.memory_space<vmem>>, vector<2x1x128xf32>
    tpu.vector_store %arg8[%c0_20, %c0_21, %c0_22], %33 {strides = array<i32>} : memref<2x1x512xf32, #tpu.memory_space<vmem>>, vector<2x1x128xf32>,
    %cst_23 = arith.constant 0.000000e+00 : f32
    %35 = vector.broadcast %cst_23 : f32 to vector<2x1x128xf32>
    %c0_24 = arith.constant 0 : index
    %c0_25 = arith.constant 0 : index
    %c384 = arith.constant 384 : index
    %36 = vector.load %arg8[%c0_24, %c0_25, %c384] : memref<2x1x512xf32, #tpu.memory_space<vmem>>, vector<2x1x128xf32>
    tpu.vector_store %arg8[%c0_24, %c0_25, %c384], %35 {strides = array<i32>} : memref<2x1x512xf32, #tpu.memory_space<vmem>>, vector<2x1x128xf32>,
    %37 = vector.shape_cast %29 : vector<1x256xf32> to vector<1x1x256xf32>
    %38 = vector.shape_cast %32 : vector<1x256xf32> to vector<1x1x256xf32>
    %39 = tpu.concatenate %37, %38 in 0 : vector<1x1x256xf32>, vector<1x1x256xf32> -> vector<2x1x256xf32>
    %c0_26 = arith.constant 0 : index
    %c0_27 = arith.constant 0 : index
    %c128 = arith.constant 128 : index
    %40 = vector.load %arg8[%c0_26, %c0_27, %c128] : memref<2x1x512xf32, #tpu.memory_space<vmem>>, vector<2x1x256xf32>
    tpu.vector_store %arg8[%c0_26, %c0_27, %c128], %39 {strides = array<i32>} : memref<2x1x512xf32, #tpu.memory_space<vmem>>, vector<2x1x256xf32>,
    %41 = tpu.iota {dimensions = array<i32: 1>} : vector<1x256xi32>
    %c16_i32 = arith.constant 16 : i32
    %c0_i32 = arith.constant 0 : i32
    %42 = arith.cmpi eq, %c16_i32, %c0_i32 : i32
    %c1_i32 = arith.constant 1 : i32
    %43 = arith.select %42, %c1_i32, %c16_i32 : i32
    %44 = vector.broadcast %43 : i32 to vector<1x256xi32>
    %45 = arith.remsi %41, %44 : vector<1x256xi32>
    %c0_i32_28 = arith.constant 0 : i32
    %46 = vector.broadcast %c0_i32_28 : i32 to vector<1x256xi32>
    %47 = arith.cmpi ne, %45, %46 : vector<1x256xi32>
    %c0_i32_29 = arith.constant 0 : i32
    %48 = vector.broadcast %c0_i32_29 : i32 to vector<1x256xi32>
    %49 = arith.cmpi slt, %45, %48 : vector<1x256xi32>
    %c0_i32_30 = arith.constant 0 : i32
    %50 = arith.cmpi slt, %43, %c0_i32_30 : i32
    %51 = vector.broadcast %50 : i1 to vector<1x256xi1>
    %52 = vector.broadcast %51 : vector<1x256xi1> to vector<1x256xi1>
    %53 = arith.xori %49, %52 : vector<1x256xi1>
    %54 = arith.andi %53, %47 : vector<1x256xi1>
    %55 = vector.broadcast %43 : i32 to vector<1x256xi32>
    %56 = arith.addi %45, %55 : vector<1x256xi32>
    %57 = arith.select %54, %56, %45 : vector<1x256xi1>, vector<1x256xi32>
    %c-3_i32 = arith.constant -3 : i32
    %58 = vector.broadcast %c-3_i32 : i32 to vector<1x256xi32>
    %59 = arith.addi %57, %58 : vector<1x256xi32>
    %c0_i32_31 = arith.constant 0 : i32
    %60 = vector.broadcast %c0_i32_31 : i32 to vector<1x256xi32>
    %61 = arith.cmpi sge, %59, %60 : vector<1x256xi32>
    %c-3_i32_32 = arith.constant -3 : i32
    %62 = vector.broadcast %c-3_i32_32 : i32 to vector<1x256xi32>
    %63 = arith.addi %57, %62 : vector<1x256xi32>
    %c16_i32_33 = arith.constant 16 : i32
    %64 = vector.broadcast %c16_i32_33 : i32 to vector<1x256xi32>
    %65 = arith.cmpi slt, %63, %64 : vector<1x256xi32>
    %66 = arith.andi %61, %65 : vector<1x256xi1>
    %c-2_i32 = arith.constant -2 : i32
    %67 = vector.broadcast %c-2_i32 : i32 to vector<1x256xi32>
    %68 = arith.addi %57, %67 : vector<1x256xi32>
    %c0_i32_34 = arith.constant 0 : i32
    %69 = vector.broadcast %c0_i32_34 : i32 to vector<1x256xi32>
    %70 = arith.cmpi sge, %68, %69 : vector<1x256xi32>
    %c-2_i32_35 = arith.constant -2 : i32
    %71 = vector.broadcast %c-2_i32_35 : i32 to vector<1x256xi32>
    %72 = arith.addi %57, %71 : vector<1x256xi32>
    %c16_i32_36 = arith.constant 16 : i32
    %73 = vector.broadcast %c16_i32_36 : i32 to vector<1x256xi32>
    %74 = arith.cmpi slt, %72, %73 : vector<1x256xi32>
    %75 = arith.andi %70, %74 : vector<1x256xi1>
    %c-1_i32 = arith.constant -1 : i32
    %76 = vector.broadcast %c-1_i32 : i32 to vector<1x256xi32>
    %77 = arith.addi %57, %76 : vector<1x256xi32>
    %c0_i32_37 = arith.constant 0 : i32
    %78 = vector.broadcast %c0_i32_37 : i32 to vector<1x256xi32>
    %79 = arith.cmpi sge, %77, %78 : vector<1x256xi32>
    %c-1_i32_38 = arith.constant -1 : i32
    %80 = vector.broadcast %c-1_i32_38 : i32 to vector<1x256xi32>
    %81 = arith.addi %57, %80 : vector<1x256xi32>
    %c16_i32_39 = arith.constant 16 : i32
    %82 = vector.broadcast %c16_i32_39 : i32 to vector<1x256xi32>
    %83 = arith.cmpi slt, %81, %82 : vector<1x256xi32>
    %84 = arith.andi %79, %83 : vector<1x256xi1>
    %c0_i32_40 = arith.constant 0 : i32
    %85 = vector.broadcast %c0_i32_40 : i32 to vector<1x256xi32>
    %86 = arith.addi %57, %85 : vector<1x256xi32>
    %c0_i32_41 = arith.constant 0 : i32
    %87 = vector.broadcast %c0_i32_41 : i32 to vector<1x256xi32>
    %88 = arith.cmpi sge, %86, %87 : vector<1x256xi32>
    %c0_i32_42 = arith.constant 0 : i32
    %89 = vector.broadcast %c0_i32_42 : i32 to vector<1x256xi32>
    %90 = arith.addi %57, %89 : vector<1x256xi32>
    %c16_i32_43 = arith.constant 16 : i32
    %91 = vector.broadcast %c16_i32_43 : i32 to vector<1x256xi32>
    %92 = arith.cmpi slt, %90, %91 : vector<1x256xi32>
    %93 = arith.andi %88, %92 : vector<1x256xi1>
    %c1_i32_44 = arith.constant 1 : i32
    %94 = vector.broadcast %c1_i32_44 : i32 to vector<1x256xi32>
    %95 = arith.addi %57, %94 : vector<1x256xi32>
    %c0_i32_45 = arith.constant 0 : i32
    %96 = vector.broadcast %c0_i32_45 : i32 to vector<1x256xi32>
    %97 = arith.cmpi sge, %95, %96 : vector<1x256xi32>
    %c1_i32_46 = arith.constant 1 : i32
    %98 = vector.broadcast %c1_i32_46 : i32 to vector<1x256xi32>
    %99 = arith.addi %57, %98 : vector<1x256xi32>
    %c16_i32_47 = arith.constant 16 : i32
    %100 = vector.broadcast %c16_i32_47 : i32 to vector<1x256xi32>
    %101 = arith.cmpi slt, %99, %100 : vector<1x256xi32>
    %102 = arith.andi %97, %101 : vector<1x256xi1>
    %c2_i32 = arith.constant 2 : i32
    %103 = vector.broadcast %c2_i32 : i32 to vector<1x256xi32>
    %104 = arith.addi %57, %103 : vector<1x256xi32>
    %c0_i32_48 = arith.constant 0 : i32
    %105 = vector.broadcast %c0_i32_48 : i32 to vector<1x256xi32>
    %106 = arith.cmpi sge, %104, %105 : vector<1x256xi32>
    %c2_i32_49 = arith.constant 2 : i32
    %107 = vector.broadcast %c2_i32_49 : i32 to vector<1x256xi32>
    %108 = arith.addi %57, %107 : vector<1x256xi32>
    %c16_i32_50 = arith.constant 16 : i32
    %109 = vector.broadcast %c16_i32_50 : i32 to vector<1x256xi32>
    %110 = arith.cmpi slt, %108, %109 : vector<1x256xi32>
    %111 = arith.andi %106, %110 : vector<1x256xi1>
    %c3_i32 = arith.constant 3 : i32
    %112 = vector.broadcast %c3_i32 : i32 to vector<1x256xi32>
    %113 = arith.addi %57, %112 : vector<1x256xi32>
    %c0_i32_51 = arith.constant 0 : i32
    %114 = vector.broadcast %c0_i32_51 : i32 to vector<1x256xi32>
    %115 = arith.cmpi sge, %113, %114 : vector<1x256xi32>
    %c3_i32_52 = arith.constant 3 : i32
    %116 = vector.broadcast %c3_i32_52 : i32 to vector<1x256xi32>
    %117 = arith.addi %57, %116 : vector<1x256xi32>
    %c16_i32_53 = arith.constant 16 : i32
    %118 = vector.broadcast %c16_i32_53 : i32 to vector<1x256xi32>
    %119 = arith.cmpi slt, %117, %118 : vector<1x256xi32>
    %120 = arith.andi %115, %119 : vector<1x256xi1>
    %c0_54 = arith.constant 0 : index
    %121 = memref.load %arg6[%c0_54] : memref<99xf32, #tpu.memory_space<smem>>
    %c1 = arith.constant 1 : index
    %122 = memref.load %arg6[%c1] : memref<99xf32, #tpu.memory_space<smem>>
    %c2 = arith.constant 2 : index
    %123 = memref.load %arg6[%c2] : memref<99xf32, #tpu.memory_space<smem>>
    %c3 = arith.constant 3 : index
    %124 = memref.load %arg6[%c3] : memref<99xf32, #tpu.memory_space<smem>>
    %c4 = arith.constant 4 : index
    %125 = memref.load %arg6[%c4] : memref<99xf32, #tpu.memory_space<smem>>
    %c5 = arith.constant 5 : index
    %126 = memref.load %arg6[%c5] : memref<99xf32, #tpu.memory_space<smem>>
    %c6 = arith.constant 6 : index
    %127 = memref.load %arg6[%c6] : memref<99xf32, #tpu.memory_space<smem>>
    %c7 = arith.constant 7 : index
    %128 = memref.load %arg6[%c7] : memref<99xf32, #tpu.memory_space<smem>>
    %c8 = arith.constant 8 : index
    %129 = memref.load %arg6[%c8] : memref<99xf32, #tpu.memory_space<smem>>
    %c9 = arith.constant 9 : index
    %130 = memref.load %arg6[%c9] : memref<99xf32, #tpu.memory_space<smem>>
    %c10 = arith.constant 10 : index
    %131 = memref.load %arg6[%c10] : memref<99xf32, #tpu.memory_space<smem>>
    %c11 = arith.constant 11 : index
    %132 = memref.load %arg6[%c11] : memref<99xf32, #tpu.memory_space<smem>>
    %c12 = arith.constant 12 : index
    %133 = memref.load %arg6[%c12] : memref<99xf32, #tpu.memory_space<smem>>
    %c13 = arith.constant 13 : index
    %134 = memref.load %arg6[%c13] : memref<99xf32, #tpu.memory_space<smem>>
    %c14 = arith.constant 14 : index
    %135 = memref.load %arg6[%c14] : memref<99xf32, #tpu.memory_space<smem>>
    %c15 = arith.constant 15 : index
    %136 = memref.load %arg6[%c15] : memref<99xf32, #tpu.memory_space<smem>>
    %c16 = arith.constant 16 : index
    %137 = memref.load %arg6[%c16] : memref<99xf32, #tpu.memory_space<smem>>
    %c17 = arith.constant 17 : index
    %138 = memref.load %arg6[%c17] : memref<99xf32, #tpu.memory_space<smem>>
    %c18 = arith.constant 18 : index
    %139 = memref.load %arg6[%c18] : memref<99xf32, #tpu.memory_space<smem>>
    %c19 = arith.constant 19 : index
    %140 = memref.load %arg6[%c19] : memref<99xf32, #tpu.memory_space<smem>>
    %c20 = arith.constant 20 : index
    %141 = memref.load %arg6[%c20] : memref<99xf32, #tpu.memory_space<smem>>
    %c21 = arith.constant 21 : index
    %142 = memref.load %arg6[%c21] : memref<99xf32, #tpu.memory_space<smem>>
    %c22 = arith.constant 22 : index
    %143 = memref.load %arg6[%c22] : memref<99xf32, #tpu.memory_space<smem>>
    %c23 = arith.constant 23 : index
    %144 = memref.load %arg6[%c23] : memref<99xf32, #tpu.memory_space<smem>>
    %c24 = arith.constant 24 : index
    %145 = memref.load %arg6[%c24] : memref<99xf32, #tpu.memory_space<smem>>
    %c25 = arith.constant 25 : index
    %146 = memref.load %arg6[%c25] : memref<99xf32, #tpu.memory_space<smem>>
    %c26 = arith.constant 26 : index
    %147 = memref.load %arg6[%c26] : memref<99xf32, #tpu.memory_space<smem>>
    %c27 = arith.constant 27 : index
    %148 = memref.load %arg6[%c27] : memref<99xf32, #tpu.memory_space<smem>>
    %c28 = arith.constant 28 : index
    %149 = memref.load %arg6[%c28] : memref<99xf32, #tpu.memory_space<smem>>
    %c29 = arith.constant 29 : index
    %150 = memref.load %arg6[%c29] : memref<99xf32, #tpu.memory_space<smem>>
    %c30 = arith.constant 30 : index
    %151 = memref.load %arg6[%c30] : memref<99xf32, #tpu.memory_space<smem>>
    %c31 = arith.constant 31 : index
    %152 = memref.load %arg6[%c31] : memref<99xf32, #tpu.memory_space<smem>>
    %c32 = arith.constant 32 : index
    %153 = memref.load %arg6[%c32] : memref<99xf32, #tpu.memory_space<smem>>
    %c33 = arith.constant 33 : index
    %154 = memref.load %arg6[%c33] : memref<99xf32, #tpu.memory_space<smem>>
    %c34 = arith.constant 34 : index
    %155 = memref.load %arg6[%c34] : memref<99xf32, #tpu.memory_space<smem>>
    %c35 = arith.constant 35 : index
    %156 = memref.load %arg6[%c35] : memref<99xf32, #tpu.memory_space<smem>>
    %c36 = arith.constant 36 : index
    %157 = memref.load %arg6[%c36] : memref<99xf32, #tpu.memory_space<smem>>
    %c37 = arith.constant 37 : index
    %158 = memref.load %arg6[%c37] : memref<99xf32, #tpu.memory_space<smem>>
    %c38 = arith.constant 38 : index
    %159 = memref.load %arg6[%c38] : memref<99xf32, #tpu.memory_space<smem>>
    %c39 = arith.constant 39 : index
    %160 = memref.load %arg6[%c39] : memref<99xf32, #tpu.memory_space<smem>>
    %c40 = arith.constant 40 : index
    %161 = memref.load %arg6[%c40] : memref<99xf32, #tpu.memory_space<smem>>
    %c41 = arith.constant 41 : index
    %162 = memref.load %arg6[%c41] : memref<99xf32, #tpu.memory_space<smem>>
    %c42 = arith.constant 42 : index
    %163 = memref.load %arg6[%c42] : memref<99xf32, #tpu.memory_space<smem>>
    %c43 = arith.constant 43 : index
    %164 = memref.load %arg6[%c43] : memref<99xf32, #tpu.memory_space<smem>>
    %c44 = arith.constant 44 : index
    %165 = memref.load %arg6[%c44] : memref<99xf32, #tpu.memory_space<smem>>
    %c45 = arith.constant 45 : index
    %166 = memref.load %arg6[%c45] : memref<99xf32, #tpu.memory_space<smem>>
    %c46 = arith.constant 46 : index
    %167 = memref.load %arg6[%c46] : memref<99xf32, #tpu.memory_space<smem>>
    %c47 = arith.constant 47 : index
    %168 = memref.load %arg6[%c47] : memref<99xf32, #tpu.memory_space<smem>>
    %c48 = arith.constant 48 : index
    %169 = memref.load %arg6[%c48] : memref<99xf32, #tpu.memory_space<smem>>
    %c49 = arith.constant 49 : index
    %170 = memref.load %arg6[%c49] : memref<99xf32, #tpu.memory_space<smem>>
    %c50 = arith.constant 50 : index
    %171 = memref.load %arg6[%c50] : memref<99xf32, #tpu.memory_space<smem>>
    %c51 = arith.constant 51 : index
    %172 = memref.load %arg6[%c51] : memref<99xf32, #tpu.memory_space<smem>>
    %c52 = arith.constant 52 : index
    %173 = memref.load %arg6[%c52] : memref<99xf32, #tpu.memory_space<smem>>
    %c53 = arith.constant 53 : index
    %174 = memref.load %arg6[%c53] : memref<99xf32, #tpu.memory_space<smem>>
    %c54 = arith.constant 54 : index
    %175 = memref.load %arg6[%c54] : memref<99xf32, #tpu.memory_space<smem>>
    %c55 = arith.constant 55 : index
    %176 = memref.load %arg6[%c55] : memref<99xf32, #tpu.memory_space<smem>>
    %c56 = arith.constant 56 : index
    %177 = memref.load %arg6[%c56] : memref<99xf32, #tpu.memory_space<smem>>
    %c57 = arith.constant 57 : index
    %178 = memref.load %arg6[%c57] : memref<99xf32, #tpu.memory_space<smem>>
    %c58 = arith.constant 58 : index
    %179 = memref.load %arg6[%c58] : memref<99xf32, #tpu.memory_space<smem>>
    %c59 = arith.constant 59 : index
    %180 = memref.load %arg6[%c59] : memref<99xf32, #tpu.memory_space<smem>>
    %c60 = arith.constant 60 : index
    %181 = memref.load %arg6[%c60] : memref<99xf32, #tpu.memory_space<smem>>
    %c61 = arith.constant 61 : index
    %182 = memref.load %arg6[%c61] : memref<99xf32, #tpu.memory_space<smem>>
    %c62 = arith.constant 62 : index
    %183 = memref.load %arg6[%c62] : memref<99xf32, #tpu.memory_space<smem>>
    %c63 = arith.constant 63 : index
    %184 = memref.load %arg6[%c63] : memref<99xf32, #tpu.memory_space<smem>>
    %c64 = arith.constant 64 : index
    %185 = memref.load %arg6[%c64] : memref<99xf32, #tpu.memory_space<smem>>
    %c65 = arith.constant 65 : index
    %186 = memref.load %arg6[%c65] : memref<99xf32, #tpu.memory_space<smem>>
    %c66 = arith.constant 66 : index
    %187 = memref.load %arg6[%c66] : memref<99xf32, #tpu.memory_space<smem>>
    %c67 = arith.constant 67 : index
    %188 = memref.load %arg6[%c67] : memref<99xf32, #tpu.memory_space<smem>>
    %c68 = arith.constant 68 : index
    %189 = memref.load %arg6[%c68] : memref<99xf32, #tpu.memory_space<smem>>
    %c69 = arith.constant 69 : index
    %190 = memref.load %arg6[%c69] : memref<99xf32, #tpu.memory_space<smem>>
    %c70 = arith.constant 70 : index
    %191 = memref.load %arg6[%c70] : memref<99xf32, #tpu.memory_space<smem>>
    %c71 = arith.constant 71 : index
    %192 = memref.load %arg6[%c71] : memref<99xf32, #tpu.memory_space<smem>>
    %c72 = arith.constant 72 : index
    %193 = memref.load %arg6[%c72] : memref<99xf32, #tpu.memory_space<smem>>
    %c73 = arith.constant 73 : index
    %194 = memref.load %arg6[%c73] : memref<99xf32, #tpu.memory_space<smem>>
    %c74 = arith.constant 74 : index
    %195 = memref.load %arg6[%c74] : memref<99xf32, #tpu.memory_space<smem>>
    %c75 = arith.constant 75 : index
    %196 = memref.load %arg6[%c75] : memref<99xf32, #tpu.memory_space<smem>>
    %c76 = arith.constant 76 : index
    %197 = memref.load %arg6[%c76] : memref<99xf32, #tpu.memory_space<smem>>
    %c77 = arith.constant 77 : index
    %198 = memref.load %arg6[%c77] : memref<99xf32, #tpu.memory_space<smem>>
    %c78 = arith.constant 78 : index
    %199 = memref.load %arg6[%c78] : memref<99xf32, #tpu.memory_space<smem>>
    %c79 = arith.constant 79 : index
    %200 = memref.load %arg6[%c79] : memref<99xf32, #tpu.memory_space<smem>>
    %c80 = arith.constant 80 : index
    %201 = memref.load %arg6[%c80] : memref<99xf32, #tpu.memory_space<smem>>
    %c81 = arith.constant 81 : index
    %202 = memref.load %arg6[%c81] : memref<99xf32, #tpu.memory_space<smem>>
    %c82 = arith.constant 82 : index
    %203 = memref.load %arg6[%c82] : memref<99xf32, #tpu.memory_space<smem>>
    %c83 = arith.constant 83 : index
    %204 = memref.load %arg6[%c83] : memref<99xf32, #tpu.memory_space<smem>>
    %c84 = arith.constant 84 : index
    %205 = memref.load %arg6[%c84] : memref<99xf32, #tpu.memory_space<smem>>
    %c85 = arith.constant 85 : index
    %206 = memref.load %arg6[%c85] : memref<99xf32, #tpu.memory_space<smem>>
    %c86 = arith.constant 86 : index
    %207 = memref.load %arg6[%c86] : memref<99xf32, #tpu.memory_space<smem>>
    %c87 = arith.constant 87 : index
    %208 = memref.load %arg6[%c87] : memref<99xf32, #tpu.memory_space<smem>>
    %c88 = arith.constant 88 : index
    %209 = memref.load %arg6[%c88] : memref<99xf32, #tpu.memory_space<smem>>
    %c89 = arith.constant 89 : index
    %210 = memref.load %arg6[%c89] : memref<99xf32, #tpu.memory_space<smem>>
    %c90 = arith.constant 90 : index
    %211 = memref.load %arg6[%c90] : memref<99xf32, #tpu.memory_space<smem>>
    %c91 = arith.constant 91 : index
    %212 = memref.load %arg6[%c91] : memref<99xf32, #tpu.memory_space<smem>>
    %c92 = arith.constant 92 : index
    %213 = memref.load %arg6[%c92] : memref<99xf32, #tpu.memory_space<smem>>
    %c93 = arith.constant 93 : index
    %214 = memref.load %arg6[%c93] : memref<99xf32, #tpu.memory_space<smem>>
    %c94 = arith.constant 94 : index
    %215 = memref.load %arg6[%c94] : memref<99xf32, #tpu.memory_space<smem>>
    %c95 = arith.constant 95 : index
    %216 = memref.load %arg6[%c95] : memref<99xf32, #tpu.memory_space<smem>>
    %c96 = arith.constant 96 : index
    %217 = memref.load %arg6[%c96] : memref<99xf32, #tpu.memory_space<smem>>
    %c97 = arith.constant 97 : index
    %218 = memref.load %arg6[%c97] : memref<99xf32, #tpu.memory_space<smem>>
    %c98 = arith.constant 98 : index
    %219 = memref.load %arg6[%c98] : memref<99xf32, #tpu.memory_space<smem>>
    %cst_55 = arith.constant 0.000000e+00 : f32
    %220 = vector.broadcast %cst_55 : f32 to vector<1x256xf32>
    %cst_56 = arith.constant 0.000000e+00 : f32
    %221 = vector.broadcast %cst_56 : f32 to vector<1x256xf32>
    %cst_57 = arith.constant 0.000000e+00 : f32
    %222 = vector.broadcast %cst_57 : f32 to vector<1x256xf32>
    %cst_58 = arith.constant 0.000000e+00 : f32
    %223 = vector.broadcast %cst_58 : f32 to vector<1x256xf32>
    %cst_59 = arith.constant 0.000000e+00 : f32
    %224 = vector.broadcast %cst_59 : f32 to vector<1x256xf32>
    %cst_60 = arith.constant 0.000000e+00 : f32
    %225 = vector.broadcast %cst_60 : f32 to vector<1x256xf32>
    %cst_61 = arith.constant 0.000000e+00 : f32
    %226 = vector.broadcast %cst_61 : f32 to vector<1x256xf32>
    %c0_62 = arith.constant 0 : index
    %c0_63 = arith.constant 0 : index
    %c77_64 = arith.constant 77 : index
    %227 = vector.load %arg8[%c0_62, %c0_63, %c77_64] : memref<2x1x512xf32, #tpu.memory_space<vmem>>, vector<1x1x262xf32>
    %228 = vector.shape_cast %227 : vector<1x1x262xf32> to vector<1x262xf32>
    %229 = vector.extract_strided_slice %228 {offsets = [0, 0], sizes = [1, 256], strides = [1, 1]} : vector<1x262xf32> to vector<1x256xf32>
    %230 = vector.broadcast %121 : f32 to vector<1x256xf32>
    %231 = arith.mulf %230, %229 : vector<1x256xf32>
    %232 = arith.addf %220, %231 : vector<1x256xf32>
    %233 = vector.extract_strided_slice %228 {offsets = [0, 1], sizes = [1, 256], strides = [1, 1]} : vector<1x262xf32> to vector<1x256xf32>
    %234 = vector.broadcast %122 : f32 to vector<1x256xf32>
    %235 = arith.mulf %234, %233 : vector<1x256xf32>
    %236 = arith.addf %221, %235 : vector<1x256xf32>
    %237 = vector.extract_strided_slice %228 {offsets = [0, 2], sizes = [1, 256], strides = [1, 1]} : vector<1x262xf32> to vector<1x256xf32>
    %238 = vector.broadcast %123 : f32 to vector<1x256xf32>
    %239 = arith.mulf %238, %237 : vector<1x256xf32>
    %240 = arith.addf %222, %239 : vector<1x256xf32>
    %241 = vector.extract_strided_slice %228 {offsets = [0, 3], sizes = [1, 256], strides = [1, 1]} : vector<1x262xf32> to vector<1x256xf32>
    %242 = vector.broadcast %124 : f32 to vector<1x256xf32>
    %243 = arith.mulf %242, %241 : vector<1x256xf32>
    %244 = arith.addf %223, %243 : vector<1x256xf32>
    %245 = vector.extract_strided_slice %228 {offsets = [0, 4], sizes = [1, 256], strides = [1, 1]} : vector<1x262xf32> to vector<1x256xf32>
    %246 = vector.broadcast %125 : f32 to vector<1x256xf32>
    %247 = arith.mulf %246, %245 : vector<1x256xf32>
    %248 = arith.addf %224, %247 : vector<1x256xf32>
    %249 = vector.extract_strided_slice %228 {offsets = [0, 5], sizes = [1, 256], strides = [1, 1]} : vector<1x262xf32> to vector<1x256xf32>
    %250 = vector.broadcast %126 : f32 to vector<1x256xf32>
    %251 = arith.mulf %250, %249 : vector<1x256xf32>
    %252 = arith.addf %225, %251 : vector<1x256xf32>
    %253 = vector.extract_strided_slice %228 {offsets = [0, 6], sizes = [1, 256], strides = [1, 1]} : vector<1x262xf32> to vector<1x256xf32>
    %254 = vector.broadcast %127 : f32 to vector<1x256xf32>
    %255 = arith.mulf %254, %253 : vector<1x256xf32>
    %256 = arith.addf %226, %255 : vector<1x256xf32>
    %c0_65 = arith.constant 0 : index
    %c0_66 = arith.constant 0 : index
    %c93_67 = arith.constant 93 : index
    %257 = vector.load %arg8[%c0_65, %c0_66, %c93_67] : memref<2x1x512xf32, #tpu.memory_space<vmem>>, vector<1x1x262xf32>
    %258 = vector.shape_cast %257 : vector<1x1x262xf32> to vector<1x262xf32>
    %259 = vector.extract_strided_slice %258 {offsets = [0, 0], sizes = [1, 256], strides = [1, 1]} : vector<1x262xf32> to vector<1x256xf32>
    %260 = vector.broadcast %128 : f32 to vector<1x256xf32>
    %261 = arith.mulf %260, %259 : vector<1x256xf32>
    %262 = arith.addf %232, %261 : vector<1x256xf32>
    %263 = vector.extract_strided_slice %258 {offsets = [0, 1], sizes = [1, 256], strides = [1, 1]} : vector<1x262xf32> to vector<1x256xf32>
    %264 = vector.broadcast %129 : f32 to vector<1x256xf32>
    %265 = arith.mulf %264, %263 : vector<1x256xf32>
    %266 = arith.addf %236, %265 : vector<1x256xf32>
    %267 = vector.extract_strided_slice %258 {offsets = [0, 2], sizes = [1, 256], strides = [1, 1]} : vector<1x262xf32> to vector<1x256xf32>
    %268 = vector.broadcast %130 : f32 to vector<1x256xf32>
    %269 = arith.mulf %268, %267 : vector<1x256xf32>
    %270 = arith.addf %240, %269 : vector<1x256xf32>
    %271 = vector.extract_strided_slice %258 {offsets = [0, 3], sizes = [1, 256], strides = [1, 1]} : vector<1x262xf32> to vector<1x256xf32>
    %272 = vector.broadcast %131 : f32 to vector<1x256xf32>
    %273 = arith.mulf %272, %271 : vector<1x256xf32>
    %274 = arith.addf %244, %273 : vector<1x256xf32>
    %275 = vector.extract_strided_slice %258 {offsets = [0, 4], sizes = [1, 256], strides = [1, 1]} : vector<1x262xf32> to vector<1x256xf32>
    %276 = vector.broadcast %132 : f32 to vector<1x256xf32>
    %277 = arith.mulf %276, %275 : vector<1x256xf32>
    %278 = arith.addf %248, %277 : vector<1x256xf32>
    %279 = vector.extract_strided_slice %258 {offsets = [0, 5], sizes = [1, 256], strides = [1, 1]} : vector<1x262xf32> to vector<1x256xf32>
    %280 = vector.broadcast %133 : f32 to vector<1x256xf32>
    %281 = arith.mulf %280, %279 : vector<1x256xf32>
    %282 = arith.addf %252, %281 : vector<1x256xf32>
    %283 = vector.extract_strided_slice %258 {offsets = [0, 6], sizes = [1, 256], strides = [1, 1]} : vector<1x262xf32> to vector<1x256xf32>
    %284 = vector.broadcast %134 : f32 to vector<1x256xf32>
    %285 = arith.mulf %284, %283 : vector<1x256xf32>
    %286 = arith.addf %256, %285 : vector<1x256xf32>
    %c0_68 = arith.constant 0 : index
    %c0_69 = arith.constant 0 : index
    %c109 = arith.constant 109 : index
    %287 = vector.load %arg8[%c0_68, %c0_69, %c109] : memref<2x1x512xf32, #tpu.memory_space<vmem>>, vector<1x1x262xf32>
    %288 = vector.shape_cast %287 : vector<1x1x262xf32> to vector<1x262xf32>
    %289 = vector.extract_strided_slice %288 {offsets = [0, 0], sizes = [1, 256], strides = [1, 1]} : vector<1x262xf32> to vector<1x256xf32>
    %290 = vector.broadcast %135 : f32 to vector<1x256xf32>
    %291 = arith.mulf %290, %289 : vector<1x256xf32>
    %292 = arith.addf %262, %291 : vector<1x256xf32>
    %293 = vector.extract_strided_slice %288 {offsets = [0, 1], sizes = [1, 256], strides = [1, 1]} : vector<1x262xf32> to vector<1x256xf32>
    %294 = vector.broadcast %136 : f32 to vector<1x256xf32>
    %295 = arith.mulf %294, %293 : vector<1x256xf32>
    %296 = arith.addf %266, %295 : vector<1x256xf32>
    %297 = vector.extract_strided_slice %288 {offsets = [0, 2], sizes = [1, 256], strides = [1, 1]} : vector<1x262xf32> to vector<1x256xf32>
    %298 = vector.broadcast %137 : f32 to vector<1x256xf32>
    %299 = arith.mulf %298, %297 : vector<1x256xf32>
    %300 = arith.addf %270, %299 : vector<1x256xf32>
    %301 = vector.extract_strided_slice %288 {offsets = [0, 3], sizes = [1, 256], strides = [1, 1]} : vector<1x262xf32> to vector<1x256xf32>
    %302 = vector.broadcast %138 : f32 to vector<1x256xf32>
    %303 = arith.mulf %302, %301 : vector<1x256xf32>
    %304 = arith.addf %274, %303 : vector<1x256xf32>
    %305 = vector.extract_strided_slice %288 {offsets = [0, 4], sizes = [1, 256], strides = [1, 1]} : vector<1x262xf32> to vector<1x256xf32>
    %306 = vector.broadcast %139 : f32 to vector<1x256xf32>
    %307 = arith.mulf %306, %305 : vector<1x256xf32>
    %308 = arith.addf %278, %307 : vector<1x256xf32>
    %309 = vector.extract_strided_slice %288 {offsets = [0, 5], sizes = [1, 256], strides = [1, 1]} : vector<1x262xf32> to vector<1x256xf32>
    %310 = vector.broadcast %140 : f32 to vector<1x256xf32>
    %311 = arith.mulf %310, %309 : vector<1x256xf32>
    %312 = arith.addf %282, %311 : vector<1x256xf32>
    %313 = vector.extract_strided_slice %288 {offsets = [0, 6], sizes = [1, 256], strides = [1, 1]} : vector<1x262xf32> to vector<1x256xf32>
    %314 = vector.broadcast %141 : f32 to vector<1x256xf32>
    %315 = arith.mulf %314, %313 : vector<1x256xf32>
    %316 = arith.addf %286, %315 : vector<1x256xf32>
    %c0_70 = arith.constant 0 : index
    %c0_71 = arith.constant 0 : index
    %c125 = arith.constant 125 : index
    %317 = vector.load %arg8[%c0_70, %c0_71, %c125] : memref<2x1x512xf32, #tpu.memory_space<vmem>>, vector<1x1x262xf32>
    %318 = vector.shape_cast %317 : vector<1x1x262xf32> to vector<1x262xf32>
    %319 = vector.extract_strided_slice %318 {offsets = [0, 0], sizes = [1, 256], strides = [1, 1]} : vector<1x262xf32> to vector<1x256xf32>
    %320 = vector.broadcast %142 : f32 to vector<1x256xf32>
    %321 = arith.mulf %320, %319 : vector<1x256xf32>
    %322 = arith.addf %292, %321 : vector<1x256xf32>
    %323 = vector.extract_strided_slice %318 {offsets = [0, 1], sizes = [1, 256], strides = [1, 1]} : vector<1x262xf32> to vector<1x256xf32>
    %324 = vector.broadcast %143 : f32 to vector<1x256xf32>
    %325 = arith.mulf %324, %323 : vector<1x256xf32>
    %326 = arith.addf %296, %325 : vector<1x256xf32>
    %327 = vector.extract_strided_slice %318 {offsets = [0, 2], sizes = [1, 256], strides = [1, 1]} : vector<1x262xf32> to vector<1x256xf32>
    %328 = vector.broadcast %144 : f32 to vector<1x256xf32>
    %329 = arith.mulf %328, %327 : vector<1x256xf32>
    %330 = arith.addf %300, %329 : vector<1x256xf32>
    %331 = vector.extract_strided_slice %318 {offsets = [0, 3], sizes = [1, 256], strides = [1, 1]} : vector<1x262xf32> to vector<1x256xf32>
    %332 = vector.broadcast %145 : f32 to vector<1x256xf32>
    %333 = arith.mulf %332, %331 : vector<1x256xf32>
    %334 = arith.addf %304, %333 : vector<1x256xf32>
    %335 = vector.extract_strided_slice %318 {offsets = [0, 4], sizes = [1, 256], strides = [1, 1]} : vector<1x262xf32> to vector<1x256xf32>
    %336 = vector.broadcast %146 : f32 to vector<1x256xf32>
    %337 = arith.mulf %336, %335 : vector<1x256xf32>
    %338 = arith.addf %308, %337 : vector<1x256xf32>
    %339 = vector.extract_strided_slice %318 {offsets = [0, 5], sizes = [1, 256], strides = [1, 1]} : vector<1x262xf32> to vector<1x256xf32>
    %340 = vector.broadcast %147 : f32 to vector<1x256xf32>
    %341 = arith.mulf %340, %339 : vector<1x256xf32>
    %342 = arith.addf %312, %341 : vector<1x256xf32>
    %343 = vector.extract_strided_slice %318 {offsets = [0, 6], sizes = [1, 256], strides = [1, 1]} : vector<1x262xf32> to vector<1x256xf32>
    %344 = vector.broadcast %148 : f32 to vector<1x256xf32>
    %345 = arith.mulf %344, %343 : vector<1x256xf32>
    %346 = arith.addf %316, %345 : vector<1x256xf32>
    %c0_72 = arith.constant 0 : index
    %c0_73 = arith.constant 0 : index
    %c141 = arith.constant 141 : index
    %347 = vector.load %arg8[%c0_72, %c0_73, %c141] : memref<2x1x512xf32, #tpu.memory_space<vmem>>, vector<1x1x262xf32>
    %348 = vector.shape_cast %347 : vector<1x1x262xf32> to vector<1x262xf32>
    %349 = vector.extract_strided_slice %348 {offsets = [0, 0], sizes = [1, 256], strides = [1, 1]} : vector<1x262xf32> to vector<1x256xf32>
    %350 = vector.broadcast %149 : f32 to vector<1x256xf32>
    %351 = arith.mulf %350, %349 : vector<1x256xf32>
    %352 = arith.addf %322, %351 : vector<1x256xf32>
    %353 = vector.extract_strided_slice %348 {offsets = [0, 1], sizes = [1, 256], strides = [1, 1]} : vector<1x262xf32> to vector<1x256xf32>
    %354 = vector.broadcast %150 : f32 to vector<1x256xf32>
    %355 = arith.mulf %354, %353 : vector<1x256xf32>
    %356 = arith.addf %326, %355 : vector<1x256xf32>
    %357 = vector.extract_strided_slice %348 {offsets = [0, 2], sizes = [1, 256], strides = [1, 1]} : vector<1x262xf32> to vector<1x256xf32>
    %358 = vector.broadcast %151 : f32 to vector<1x256xf32>
    %359 = arith.mulf %358, %357 : vector<1x256xf32>
    %360 = arith.addf %330, %359 : vector<1x256xf32>
    %361 = vector.extract_strided_slice %348 {offsets = [0, 3], sizes = [1, 256], strides = [1, 1]} : vector<1x262xf32> to vector<1x256xf32>
    %362 = vector.broadcast %152 : f32 to vector<1x256xf32>
    %363 = arith.mulf %362, %361 : vector<1x256xf32>
    %364 = arith.addf %334, %363 : vector<1x256xf32>
    %365 = vector.extract_strided_slice %348 {offsets = [0, 4], sizes = [1, 256], strides = [1, 1]} : vector<1x262xf32> to vector<1x256xf32>
    %366 = vector.broadcast %153 : f32 to vector<1x256xf32>
    %367 = arith.mulf %366, %365 : vector<1x256xf32>
    %368 = arith.addf %338, %367 : vector<1x256xf32>
    %369 = vector.extract_strided_slice %348 {offsets = [0, 5], sizes = [1, 256], strides = [1, 1]} : vector<1x262xf32> to vector<1x256xf32>
    %370 = vector.broadcast %154 : f32 to vector<1x256xf32>
    %371 = arith.mulf %370, %369 : vector<1x256xf32>
    %372 = arith.addf %342, %371 : vector<1x256xf32>
    %373 = vector.extract_strided_slice %348 {offsets = [0, 6], sizes = [1, 256], strides = [1, 1]} : vector<1x262xf32> to vector<1x256xf32>
    %374 = vector.broadcast %155 : f32 to vector<1x256xf32>
    %375 = arith.mulf %374, %373 : vector<1x256xf32>
    %376 = arith.addf %346, %375 : vector<1x256xf32>
    %c0_74 = arith.constant 0 : index
    %c0_75 = arith.constant 0 : index
    %c157 = arith.constant 157 : index
    %377 = vector.load %arg8[%c0_74, %c0_75, %c157] : memref<2x1x512xf32, #tpu.memory_space<vmem>>, vector<1x1x262xf32>
    %378 = vector.shape_cast %377 : vector<1x1x262xf32> to vector<1x262xf32>
    %379 = vector.extract_strided_slice %378 {offsets = [0, 0], sizes = [1, 256], strides = [1, 1]} : vector<1x262xf32> to vector<1x256xf32>
    %380 = vector.broadcast %156 : f32 to vector<1x256xf32>
    %381 = arith.mulf %380, %379 : vector<1x256xf32>
    %382 = arith.addf %352, %381 : vector<1x256xf32>
    %383 = vector.extract_strided_slice %378 {offsets = [0, 1], sizes = [1, 256], strides = [1, 1]} : vector<1x262xf32> to vector<1x256xf32>
    %384 = vector.broadcast %157 : f32 to vector<1x256xf32>
    %385 = arith.mulf %384, %383 : vector<1x256xf32>
    %386 = arith.addf %356, %385 : vector<1x256xf32>
    %387 = vector.extract_strided_slice %378 {offsets = [0, 2], sizes = [1, 256], strides = [1, 1]} : vector<1x262xf32> to vector<1x256xf32>
    %388 = vector.broadcast %158 : f32 to vector<1x256xf32>
    %389 = arith.mulf %388, %387 : vector<1x256xf32>
    %390 = arith.addf %360, %389 : vector<1x256xf32>
    %391 = vector.extract_strided_slice %378 {offsets = [0, 3], sizes = [1, 256], strides = [1, 1]} : vector<1x262xf32> to vector<1x256xf32>
    %392 = vector.broadcast %159 : f32 to vector<1x256xf32>
    %393 = arith.mulf %392, %391 : vector<1x256xf32>
    %394 = arith.addf %364, %393 : vector<1x256xf32>
    %395 = vector.extract_strided_slice %378 {offsets = [0, 4], sizes = [1, 256], strides = [1, 1]} : vector<1x262xf32> to vector<1x256xf32>
    %396 = vector.broadcast %160 : f32 to vector<1x256xf32>
    %397 = arith.mulf %396, %395 : vector<1x256xf32>
    %398 = arith.addf %368, %397 : vector<1x256xf32>
    %399 = vector.extract_strided_slice %378 {offsets = [0, 5], sizes = [1, 256], strides = [1, 1]} : vector<1x262xf32> to vector<1x256xf32>
    %400 = vector.broadcast %161 : f32 to vector<1x256xf32>
    %401 = arith.mulf %400, %399 : vector<1x256xf32>
    %402 = arith.addf %372, %401 : vector<1x256xf32>
    %403 = vector.extract_strided_slice %378 {offsets = [0, 6], sizes = [1, 256], strides = [1, 1]} : vector<1x262xf32> to vector<1x256xf32>
    %404 = vector.broadcast %162 : f32 to vector<1x256xf32>
    %405 = arith.mulf %404, %403 : vector<1x256xf32>
    %406 = arith.addf %376, %405 : vector<1x256xf32>
    %c0_76 = arith.constant 0 : index
    %c0_77 = arith.constant 0 : index
    %c173 = arith.constant 173 : index
    %407 = vector.load %arg8[%c0_76, %c0_77, %c173] : memref<2x1x512xf32, #tpu.memory_space<vmem>>, vector<1x1x262xf32>
    %408 = vector.shape_cast %407 : vector<1x1x262xf32> to vector<1x262xf32>
    %409 = vector.extract_strided_slice %408 {offsets = [0, 0], sizes = [1, 256], strides = [1, 1]} : vector<1x262xf32> to vector<1x256xf32>
    %410 = vector.broadcast %163 : f32 to vector<1x256xf32>
    %411 = arith.mulf %410, %409 : vector<1x256xf32>
    %412 = arith.addf %382, %411 : vector<1x256xf32>
    %413 = vector.extract_strided_slice %408 {offsets = [0, 1], sizes = [1, 256], strides = [1, 1]} : vector<1x262xf32> to vector<1x256xf32>
    %414 = vector.broadcast %164 : f32 to vector<1x256xf32>
    %415 = arith.mulf %414, %413 : vector<1x256xf32>
    %416 = arith.addf %386, %415 : vector<1x256xf32>
    %417 = vector.extract_strided_slice %408 {offsets = [0, 2], sizes = [1, 256], strides = [1, 1]} : vector<1x262xf32> to vector<1x256xf32>
    %418 = vector.broadcast %165 : f32 to vector<1x256xf32>
    %419 = arith.mulf %418, %417 : vector<1x256xf32>
    %420 = arith.addf %390, %419 : vector<1x256xf32>
    %421 = vector.extract_strided_slice %408 {offsets = [0, 3], sizes = [1, 256], strides = [1, 1]} : vector<1x262xf32> to vector<1x256xf32>
    %422 = vector.broadcast %166 : f32 to vector<1x256xf32>
    %423 = arith.mulf %422, %421 : vector<1x256xf32>
    %424 = arith.addf %394, %423 : vector<1x256xf32>
    %425 = vector.extract_strided_slice %408 {offsets = [0, 4], sizes = [1, 256], strides = [1, 1]} : vector<1x262xf32> to vector<1x256xf32>
    %426 = vector.broadcast %167 : f32 to vector<1x256xf32>
    %427 = arith.mulf %426, %425 : vector<1x256xf32>
    %428 = arith.addf %398, %427 : vector<1x256xf32>
    %429 = vector.extract_strided_slice %408 {offsets = [0, 5], sizes = [1, 256], strides = [1, 1]} : vector<1x262xf32> to vector<1x256xf32>
    %430 = vector.broadcast %168 : f32 to vector<1x256xf32>
    %431 = arith.mulf %430, %429 : vector<1x256xf32>
    %432 = arith.addf %402, %431 : vector<1x256xf32>
    %433 = vector.extract_strided_slice %408 {offsets = [0, 6], sizes = [1, 256], strides = [1, 1]} : vector<1x262xf32> to vector<1x256xf32>
    %434 = vector.broadcast %169 : f32 to vector<1x256xf32>
    %435 = arith.mulf %434, %433 : vector<1x256xf32>
    %436 = arith.addf %406, %435 : vector<1x256xf32>
    %c1_78 = arith.constant 1 : index
    %c0_79 = arith.constant 0 : index
    %c77_80 = arith.constant 77 : index
    %437 = vector.load %arg8[%c1_78, %c0_79, %c77_80] : memref<2x1x512xf32, #tpu.memory_space<vmem>>, vector<1x1x262xf32>
    %438 = vector.shape_cast %437 : vector<1x1x262xf32> to vector<1x262xf32>
    %439 = vector.extract_strided_slice %438 {offsets = [0, 0], sizes = [1, 256], strides = [1, 1]} : vector<1x262xf32> to vector<1x256xf32>
    %440 = vector.broadcast %170 : f32 to vector<1x256xf32>
    %441 = arith.mulf %440, %439 : vector<1x256xf32>
    %442 = arith.addf %412, %441 : vector<1x256xf32>
    %443 = vector.extract_strided_slice %438 {offsets = [0, 1], sizes = [1, 256], strides = [1, 1]} : vector<1x262xf32> to vector<1x256xf32>
    %444 = vector.broadcast %171 : f32 to vector<1x256xf32>
    %445 = arith.mulf %444, %443 : vector<1x256xf32>
    %446 = arith.addf %416, %445 : vector<1x256xf32>
    %447 = vector.extract_strided_slice %438 {offsets = [0, 2], sizes = [1, 256], strides = [1, 1]} : vector<1x262xf32> to vector<1x256xf32>
    %448 = vector.broadcast %172 : f32 to vector<1x256xf32>
    %449 = arith.mulf %448, %447 : vector<1x256xf32>
    %450 = arith.addf %420, %449 : vector<1x256xf32>
    %451 = vector.extract_strided_slice %438 {offsets = [0, 3], sizes = [1, 256], strides = [1, 1]} : vector<1x262xf32> to vector<1x256xf32>
    %452 = vector.broadcast %173 : f32 to vector<1x256xf32>
    %453 = arith.mulf %452, %451 : vector<1x256xf32>
    %454 = arith.addf %424, %453 : vector<1x256xf32>
    %455 = vector.extract_strided_slice %438 {offsets = [0, 4], sizes = [1, 256], strides = [1, 1]} : vector<1x262xf32> to vector<1x256xf32>
    %456 = vector.broadcast %174 : f32 to vector<1x256xf32>
    %457 = arith.mulf %456, %455 : vector<1x256xf32>
    %458 = arith.addf %428, %457 : vector<1x256xf32>
    %459 = vector.extract_strided_slice %438 {offsets = [0, 5], sizes = [1, 256], strides = [1, 1]} : vector<1x262xf32> to vector<1x256xf32>
    %460 = vector.broadcast %175 : f32 to vector<1x256xf32>
    %461 = arith.mulf %460, %459 : vector<1x256xf32>
    %462 = arith.addf %432, %461 : vector<1x256xf32>
    %463 = vector.extract_strided_slice %438 {offsets = [0, 6], sizes = [1, 256], strides = [1, 1]} : vector<1x262xf32> to vector<1x256xf32>
    %464 = vector.broadcast %176 : f32 to vector<1x256xf32>
    %465 = arith.mulf %464, %463 : vector<1x256xf32>
    %466 = arith.addf %436, %465 : vector<1x256xf32>
    %c1_81 = arith.constant 1 : index
    %c0_82 = arith.constant 0 : index
    %c93_83 = arith.constant 93 : index
    %467 = vector.load %arg8[%c1_81, %c0_82, %c93_83] : memref<2x1x512xf32, #tpu.memory_space<vmem>>, vector<1x1x262xf32>
    %468 = vector.shape_cast %467 : vector<1x1x262xf32> to vector<1x262xf32>
    %469 = vector.extract_strided_slice %468 {offsets = [0, 0], sizes = [1, 256], strides = [1, 1]} : vector<1x262xf32> to vector<1x256xf32>
    %470 = vector.broadcast %177 : f32 to vector<1x256xf32>
    %471 = arith.mulf %470, %469 : vector<1x256xf32>
    %472 = arith.addf %442, %471 : vector<1x256xf32>
    %473 = vector.extract_strided_slice %468 {offsets = [0, 1], sizes = [1, 256], strides = [1, 1]} : vector<1x262xf32> to vector<1x256xf32>
    %474 = vector.broadcast %178 : f32 to vector<1x256xf32>
    %475 = arith.mulf %474, %473 : vector<1x256xf32>
    %476 = arith.addf %446, %475 : vector<1x256xf32>
    %477 = vector.extract_strided_slice %468 {offsets = [0, 2], sizes = [1, 256], strides = [1, 1]} : vector<1x262xf32> to vector<1x256xf32>
    %478 = vector.broadcast %179 : f32 to vector<1x256xf32>
    %479 = arith.mulf %478, %477 : vector<1x256xf32>
    %480 = arith.addf %450, %479 : vector<1x256xf32>
    %481 = vector.extract_strided_slice %468 {offsets = [0, 3], sizes = [1, 256], strides = [1, 1]} : vector<1x262xf32> to vector<1x256xf32>
    %482 = vector.broadcast %180 : f32 to vector<1x256xf32>
    %483 = arith.mulf %482, %481 : vector<1x256xf32>
    %484 = arith.addf %454, %483 : vector<1x256xf32>
    %485 = vector.extract_strided_slice %468 {offsets = [0, 4], sizes = [1, 256], strides = [1, 1]} : vector<1x262xf32> to vector<1x256xf32>
    %486 = vector.broadcast %181 : f32 to vector<1x256xf32>
    %487 = arith.mulf %486, %485 : vector<1x256xf32>
    %488 = arith.addf %458, %487 : vector<1x256xf32>
    %489 = vector.extract_strided_slice %468 {offsets = [0, 5], sizes = [1, 256], strides = [1, 1]} : vector<1x262xf32> to vector<1x256xf32>
    %490 = vector.broadcast %182 : f32 to vector<1x256xf32>
    %491 = arith.mulf %490, %489 : vector<1x256xf32>
    %492 = arith.addf %462, %491 : vector<1x256xf32>
    %493 = vector.extract_strided_slice %468 {offsets = [0, 6], sizes = [1, 256], strides = [1, 1]} : vector<1x262xf32> to vector<1x256xf32>
    %494 = vector.broadcast %183 : f32 to vector<1x256xf32>
    %495 = arith.mulf %494, %493 : vector<1x256xf32>
    %496 = arith.addf %466, %495 : vector<1x256xf32>
    %c1_84 = arith.constant 1 : index
    %c0_85 = arith.constant 0 : index
    %c109_86 = arith.constant 109 : index
    %497 = vector.load %arg8[%c1_84, %c0_85, %c109_86] : memref<2x1x512xf32, #tpu.memory_space<vmem>>, vector<1x1x262xf32>
    %498 = vector.shape_cast %497 : vector<1x1x262xf32> to vector<1x262xf32>
    %499 = vector.extract_strided_slice %498 {offsets = [0, 0], sizes = [1, 256], strides = [1, 1]} : vector<1x262xf32> to vector<1x256xf32>
    %500 = vector.broadcast %184 : f32 to vector<1x256xf32>
    %501 = arith.mulf %500, %499 : vector<1x256xf32>
    %502 = arith.addf %472, %501 : vector<1x256xf32>
    %503 = vector.extract_strided_slice %498 {offsets = [0, 1], sizes = [1, 256], strides = [1, 1]} : vector<1x262xf32> to vector<1x256xf32>
    %504 = vector.broadcast %185 : f32 to vector<1x256xf32>
    %505 = arith.mulf %504, %503 : vector<1x256xf32>
    %506 = arith.addf %476, %505 : vector<1x256xf32>
    %507 = vector.extract_strided_slice %498 {offsets = [0, 2], sizes = [1, 256], strides = [1, 1]} : vector<1x262xf32> to vector<1x256xf32>
    %508 = vector.broadcast %186 : f32 to vector<1x256xf32>
    %509 = arith.mulf %508, %507 : vector<1x256xf32>
    %510 = arith.addf %480, %509 : vector<1x256xf32>
    %511 = vector.extract_strided_slice %498 {offsets = [0, 3], sizes = [1, 256], strides = [1, 1]} : vector<1x262xf32> to vector<1x256xf32>
    %512 = vector.broadcast %187 : f32 to vector<1x256xf32>
    %513 = arith.mulf %512, %511 : vector<1x256xf32>
    %514 = arith.addf %484, %513 : vector<1x256xf32>
    %515 = vector.extract_strided_slice %498 {offsets = [0, 4], sizes = [1, 256], strides = [1, 1]} : vector<1x262xf32> to vector<1x256xf32>
    %516 = vector.broadcast %188 : f32 to vector<1x256xf32>
    %517 = arith.mulf %516, %515 : vector<1x256xf32>
    %518 = arith.addf %488, %517 : vector<1x256xf32>
    %519 = vector.extract_strided_slice %498 {offsets = [0, 5], sizes = [1, 256], strides = [1, 1]} : vector<1x262xf32> to vector<1x256xf32>
    %520 = vector.broadcast %189 : f32 to vector<1x256xf32>
    %521 = arith.mulf %520, %519 : vector<1x256xf32>
    %522 = arith.addf %492, %521 : vector<1x256xf32>
    %523 = vector.extract_strided_slice %498 {offsets = [0, 6], sizes = [1, 256], strides = [1, 1]} : vector<1x262xf32> to vector<1x256xf32>
    %524 = vector.broadcast %190 : f32 to vector<1x256xf32>
    %525 = arith.mulf %524, %523 : vector<1x256xf32>
    %526 = arith.addf %496, %525 : vector<1x256xf32>
    %c1_87 = arith.constant 1 : index
    %c0_88 = arith.constant 0 : index
    %c125_89 = arith.constant 125 : index
    %527 = vector.load %arg8[%c1_87, %c0_88, %c125_89] : memref<2x1x512xf32, #tpu.memory_space<vmem>>, vector<1x1x262xf32>
    %528 = vector.shape_cast %527 : vector<1x1x262xf32> to vector<1x262xf32>
    %529 = vector.extract_strided_slice %528 {offsets = [0, 0], sizes = [1, 256], strides = [1, 1]} : vector<1x262xf32> to vector<1x256xf32>
    %530 = vector.broadcast %191 : f32 to vector<1x256xf32>
    %531 = arith.mulf %530, %529 : vector<1x256xf32>
    %532 = arith.addf %502, %531 : vector<1x256xf32>
    %533 = vector.extract_strided_slice %528 {offsets = [0, 1], sizes = [1, 256], strides = [1, 1]} : vector<1x262xf32> to vector<1x256xf32>
    %534 = vector.broadcast %192 : f32 to vector<1x256xf32>
    %535 = arith.mulf %534, %533 : vector<1x256xf32>
    %536 = arith.addf %506, %535 : vector<1x256xf32>
    %537 = vector.extract_strided_slice %528 {offsets = [0, 2], sizes = [1, 256], strides = [1, 1]} : vector<1x262xf32> to vector<1x256xf32>
    %538 = vector.broadcast %193 : f32 to vector<1x256xf32>
    %539 = arith.mulf %538, %537 : vector<1x256xf32>
    %540 = arith.addf %510, %539 : vector<1x256xf32>
    %541 = vector.extract_strided_slice %528 {offsets = [0, 3], sizes = [1, 256], strides = [1, 1]} : vector<1x262xf32> to vector<1x256xf32>
    %542 = vector.broadcast %194 : f32 to vector<1x256xf32>
    %543 = arith.mulf %542, %541 : vector<1x256xf32>
    %544 = arith.addf %514, %543 : vector<1x256xf32>
    %545 = vector.extract_strided_slice %528 {offsets = [0, 4], sizes = [1, 256], strides = [1, 1]} : vector<1x262xf32> to vector<1x256xf32>
    %546 = vector.broadcast %195 : f32 to vector<1x256xf32>
    %547 = arith.mulf %546, %545 : vector<1x256xf32>
    %548 = arith.addf %518, %547 : vector<1x256xf32>
    %549 = vector.extract_strided_slice %528 {offsets = [0, 5], sizes = [1, 256], strides = [1, 1]} : vector<1x262xf32> to vector<1x256xf32>
    %550 = vector.broadcast %196 : f32 to vector<1x256xf32>
    %551 = arith.mulf %550, %549 : vector<1x256xf32>
    %552 = arith.addf %522, %551 : vector<1x256xf32>
    %553 = vector.extract_strided_slice %528 {offsets = [0, 6], sizes = [1, 256], strides = [1, 1]} : vector<1x262xf32> to vector<1x256xf32>
    %554 = vector.broadcast %197 : f32 to vector<1x256xf32>
    %555 = arith.mulf %554, %553 : vector<1x256xf32>
    %556 = arith.addf %526, %555 : vector<1x256xf32>
    %c1_90 = arith.constant 1 : index
    %c0_91 = arith.constant 0 : index
    %c141_92 = arith.constant 141 : index
    %557 = vector.load %arg8[%c1_90, %c0_91, %c141_92] : memref<2x1x512xf32, #tpu.memory_space<vmem>>, vector<1x1x262xf32>
    %558 = vector.shape_cast %557 : vector<1x1x262xf32> to vector<1x262xf32>
    %559 = vector.extract_strided_slice %558 {offsets = [0, 0], sizes = [1, 256], strides = [1, 1]} : vector<1x262xf32> to vector<1x256xf32>
    %560 = vector.broadcast %198 : f32 to vector<1x256xf32>
    %561 = arith.mulf %560, %559 : vector<1x256xf32>
    %562 = arith.addf %532, %561 : vector<1x256xf32>
    %563 = vector.extract_strided_slice %558 {offsets = [0, 1], sizes = [1, 256], strides = [1, 1]} : vector<1x262xf32> to vector<1x256xf32>
    %564 = vector.broadcast %199 : f32 to vector<1x256xf32>
    %565 = arith.mulf %564, %563 : vector<1x256xf32>
    %566 = arith.addf %536, %565 : vector<1x256xf32>
    %567 = vector.extract_strided_slice %558 {offsets = [0, 2], sizes = [1, 256], strides = [1, 1]} : vector<1x262xf32> to vector<1x256xf32>
    %568 = vector.broadcast %200 : f32 to vector<1x256xf32>
    %569 = arith.mulf %568, %567 : vector<1x256xf32>
    %570 = arith.addf %540, %569 : vector<1x256xf32>
    %571 = vector.extract_strided_slice %558 {offsets = [0, 3], sizes = [1, 256], strides = [1, 1]} : vector<1x262xf32> to vector<1x256xf32>
    %572 = vector.broadcast %201 : f32 to vector<1x256xf32>
    %573 = arith.mulf %572, %571 : vector<1x256xf32>
    %574 = arith.addf %544, %573 : vector<1x256xf32>
    %575 = vector.extract_strided_slice %558 {offsets = [0, 4], sizes = [1, 256], strides = [1, 1]} : vector<1x262xf32> to vector<1x256xf32>
    %576 = vector.broadcast %202 : f32 to vector<1x256xf32>
    %577 = arith.mulf %576, %575 : vector<1x256xf32>
    %578 = arith.addf %548, %577 : vector<1x256xf32>
    %579 = vector.extract_strided_slice %558 {offsets = [0, 5], sizes = [1, 256], strides = [1, 1]} : vector<1x262xf32> to vector<1x256xf32>
    %580 = vector.broadcast %203 : f32 to vector<1x256xf32>
    %581 = arith.mulf %580, %579 : vector<1x256xf32>
    %582 = arith.addf %552, %581 : vector<1x256xf32>
    %583 = vector.extract_strided_slice %558 {offsets = [0, 6], sizes = [1, 256], strides = [1, 1]} : vector<1x262xf32> to vector<1x256xf32>
    %584 = vector.broadcast %204 : f32 to vector<1x256xf32>
    %585 = arith.mulf %584, %583 : vector<1x256xf32>
    %586 = arith.addf %556, %585 : vector<1x256xf32>
    %c1_93 = arith.constant 1 : index
    %c0_94 = arith.constant 0 : index
    %c157_95 = arith.constant 157 : index
    %587 = vector.load %arg8[%c1_93, %c0_94, %c157_95] : memref<2x1x512xf32, #tpu.memory_space<vmem>>, vector<1x1x262xf32>
    %588 = vector.shape_cast %587 : vector<1x1x262xf32> to vector<1x262xf32>
    %589 = vector.extract_strided_slice %588 {offsets = [0, 0], sizes = [1, 256], strides = [1, 1]} : vector<1x262xf32> to vector<1x256xf32>
    %590 = vector.broadcast %205 : f32 to vector<1x256xf32>
    %591 = arith.mulf %590, %589 : vector<1x256xf32>
    %592 = arith.addf %562, %591 : vector<1x256xf32>
    %593 = vector.extract_strided_slice %588 {offsets = [0, 1], sizes = [1, 256], strides = [1, 1]} : vector<1x262xf32> to vector<1x256xf32>
    %594 = vector.broadcast %206 : f32 to vector<1x256xf32>
    %595 = arith.mulf %594, %593 : vector<1x256xf32>
    %596 = arith.addf %566, %595 : vector<1x256xf32>
    %597 = vector.extract_strided_slice %588 {offsets = [0, 2], sizes = [1, 256], strides = [1, 1]} : vector<1x262xf32> to vector<1x256xf32>
    %598 = vector.broadcast %207 : f32 to vector<1x256xf32>
    %599 = arith.mulf %598, %597 : vector<1x256xf32>
    %600 = arith.addf %570, %599 : vector<1x256xf32>
    %601 = vector.extract_strided_slice %588 {offsets = [0, 3], sizes = [1, 256], strides = [1, 1]} : vector<1x262xf32> to vector<1x256xf32>
    %602 = vector.broadcast %208 : f32 to vector<1x256xf32>
    %603 = arith.mulf %602, %601 : vector<1x256xf32>
    %604 = arith.addf %574, %603 : vector<1x256xf32>
    %605 = vector.extract_strided_slice %588 {offsets = [0, 4], sizes = [1, 256], strides = [1, 1]} : vector<1x262xf32> to vector<1x256xf32>
    %606 = vector.broadcast %209 : f32 to vector<1x256xf32>
    %607 = arith.mulf %606, %605 : vector<1x256xf32>
    %608 = arith.addf %578, %607 : vector<1x256xf32>
    %609 = vector.extract_strided_slice %588 {offsets = [0, 5], sizes = [1, 256], strides = [1, 1]} : vector<1x262xf32> to vector<1x256xf32>
    %610 = vector.broadcast %210 : f32 to vector<1x256xf32>
    %611 = arith.mulf %610, %609 : vector<1x256xf32>
    %612 = arith.addf %582, %611 : vector<1x256xf32>
    %613 = vector.extract_strided_slice %588 {offsets = [0, 6], sizes = [1, 256], strides = [1, 1]} : vector<1x262xf32> to vector<1x256xf32>
    %614 = vector.broadcast %211 : f32 to vector<1x256xf32>
    %615 = arith.mulf %614, %613 : vector<1x256xf32>
    %616 = arith.addf %586, %615 : vector<1x256xf32>
    %c1_96 = arith.constant 1 : index
    %c0_97 = arith.constant 0 : index
    %c173_98 = arith.constant 173 : index
    %617 = vector.load %arg8[%c1_96, %c0_97, %c173_98] : memref<2x1x512xf32, #tpu.memory_space<vmem>>, vector<1x1x262xf32>
    %618 = vector.shape_cast %617 : vector<1x1x262xf32> to vector<1x262xf32>
    %619 = vector.extract_strided_slice %618 {offsets = [0, 0], sizes = [1, 256], strides = [1, 1]} : vector<1x262xf32> to vector<1x256xf32>
    %620 = vector.broadcast %212 : f32 to vector<1x256xf32>
    %621 = arith.mulf %620, %619 : vector<1x256xf32>
    %622 = arith.addf %592, %621 : vector<1x256xf32>
    %623 = vector.extract_strided_slice %618 {offsets = [0, 1], sizes = [1, 256], strides = [1, 1]} : vector<1x262xf32> to vector<1x256xf32>
    %624 = vector.broadcast %213 : f32 to vector<1x256xf32>
    %625 = arith.mulf %624, %623 : vector<1x256xf32>
    %626 = arith.addf %596, %625 : vector<1x256xf32>
    %627 = vector.extract_strided_slice %618 {offsets = [0, 2], sizes = [1, 256], strides = [1, 1]} : vector<1x262xf32> to vector<1x256xf32>
    %628 = vector.broadcast %214 : f32 to vector<1x256xf32>
    %629 = arith.mulf %628, %627 : vector<1x256xf32>
    %630 = arith.addf %600, %629 : vector<1x256xf32>
    %631 = vector.extract_strided_slice %618 {offsets = [0, 3], sizes = [1, 256], strides = [1, 1]} : vector<1x262xf32> to vector<1x256xf32>
    %632 = vector.broadcast %215 : f32 to vector<1x256xf32>
    %633 = arith.mulf %632, %631 : vector<1x256xf32>
    %634 = arith.addf %604, %633 : vector<1x256xf32>
    %635 = vector.extract_strided_slice %618 {offsets = [0, 4], sizes = [1, 256], strides = [1, 1]} : vector<1x262xf32> to vector<1x256xf32>
    %636 = vector.broadcast %216 : f32 to vector<1x256xf32>
    %637 = arith.mulf %636, %635 : vector<1x256xf32>
    %638 = arith.addf %608, %637 : vector<1x256xf32>
    %639 = vector.extract_strided_slice %618 {offsets = [0, 5], sizes = [1, 256], strides = [1, 1]} : vector<1x262xf32> to vector<1x256xf32>
    %640 = vector.broadcast %217 : f32 to vector<1x256xf32>
    %641 = arith.mulf %640, %639 : vector<1x256xf32>
    %642 = arith.addf %612, %641 : vector<1x256xf32>
    %643 = vector.extract_strided_slice %618 {offsets = [0, 6], sizes = [1, 256], strides = [1, 1]} : vector<1x262xf32> to vector<1x256xf32>
    %644 = vector.broadcast %218 : f32 to vector<1x256xf32>
    %645 = arith.mulf %644, %643 : vector<1x256xf32>
    %646 = arith.addf %616, %645 : vector<1x256xf32>
    %647 = vector.broadcast %219 : f32 to vector<1x256xf32>
    %cst_99 = arith.constant 0.000000e+00 : f32
    %648 = vector.broadcast %cst_99 : f32 to vector<1x256xf32>
    %649 = arith.select %66, %622, %648 : vector<1x256xi1>, vector<1x256xf32>
    %650 = arith.addf %647, %649 : vector<1x256xf32>
    %cst_100 = arith.constant 0.000000e+00 : f32
    %651 = vector.broadcast %cst_100 : f32 to vector<1x256xf32>
    %652 = arith.select %75, %626, %651 : vector<1x256xi1>, vector<1x256xf32>
    %653 = arith.addf %650, %652 : vector<1x256xf32>
    %cst_101 = arith.constant 0.000000e+00 : f32
    %654 = vector.broadcast %cst_101 : f32 to vector<1x256xf32>
    %655 = arith.select %84, %630, %654 : vector<1x256xi1>, vector<1x256xf32>
    %656 = arith.addf %653, %655 : vector<1x256xf32>
    %cst_102 = arith.constant 0.000000e+00 : f32
    %657 = vector.broadcast %cst_102 : f32 to vector<1x256xf32>
    %658 = arith.select %93, %634, %657 : vector<1x256xi1>, vector<1x256xf32>
    %659 = arith.addf %656, %658 : vector<1x256xf32>
    %cst_103 = arith.constant 0.000000e+00 : f32
    %660 = vector.broadcast %cst_103 : f32 to vector<1x256xf32>
    %661 = arith.select %102, %638, %660 : vector<1x256xi1>, vector<1x256xf32>
    %662 = arith.addf %659, %661 : vector<1x256xf32>
    %cst_104 = arith.constant 0.000000e+00 : f32
    %663 = vector.broadcast %cst_104 : f32 to vector<1x256xf32>
    %664 = arith.select %111, %642, %663 : vector<1x256xi1>, vector<1x256xf32>
    %665 = arith.addf %662, %664 : vector<1x256xf32>
    %cst_105 = arith.constant 0.000000e+00 : f32
    %666 = vector.broadcast %cst_105 : f32 to vector<1x256xf32>
    %667 = arith.select %120, %646, %666 : vector<1x256xi1>, vector<1x256xf32>
    %668 = arith.addf %665, %667 : vector<1x256xf32>
    %669 = arith.negf %668 : vector<1x256xf32>
    %670 = math.exp %669 : vector<1x256xf32>
    %cst_106 = arith.constant 1.000000e+00 : f32
    %671 = vector.broadcast %cst_106 : f32 to vector<1x256xf32>
    %672 = arith.addf %671, %670 : vector<1x256xf32>
    %673 = arith.divf %671, %672 : vector<1x256xf32>
    %674 = vector.shape_cast %673 : vector<1x256xf32> to vector<1x1x256xf32>
    %675 = vector.broadcast %674 : vector<1x1x256xf32> to vector<1x32x256xf32>
    %676 = arith.mulf %28, %675 : vector<1x32x256xf32>
    %c0_107 = arith.constant 0 : index
    %c0_108 = arith.constant 0 : index
    %c0_109 = arith.constant 0 : index
    %677 = vector.load %arg7[%c0_107, %c0_108, %c0_109] : memref<1x32x256xf32, #tpu.memory_space<vmem>>, vector<1x32x256xf32>
    tpu.vector_store %arg7[%c0_107, %c0_108, %c0_109], %676 {strides = array<i32>} : memref<1x32x256xf32, #tpu.memory_space<vmem>>, vector<1x32x256xf32>,
    return
  }
  func.func @transform_0(%arg0: i32) -> (i32, i32, i32) {
    %c0_i32 = arith.constant 0 : i32
    %c0_i32_0 = arith.constant 0 : i32
    %c0_i32_1 = arith.constant 0 : i32
    return %arg0, %c0_i32, %c0_i32_0 : i32, i32, i32
  }
  func.func @transform_1(%arg0: i32) -> (i32, i32) {
    %c0_i32 = arith.constant 0 : i32
    %c0_i32_0 = arith.constant 0 : i32
    %c0_i32_1 = arith.constant 0 : i32
    return %c0_i32, %c0_i32_0 : i32, i32
  }
  func.func @transform_2(%arg0: i32) -> (i32, i32) {
    %c0_i32 = arith.constant 0 : i32
    %c0_i32_0 = arith.constant 0 : i32
    %c0_i32_1 = arith.constant 0 : i32
    return %c0_i32, %c0_i32_0 : i32, i32
  }
  func.func @transform_3(%arg0: i32) -> (i32, i32) {
    %c0_i32 = arith.constant 0 : i32
    %c0_i32_0 = arith.constant 0 : i32
    %c0_i32_1 = arith.constant 0 : i32
    return %c0_i32, %c0_i32_0 : i32, i32
  }
  func.func @transform_4(%arg0: i32) -> (i32, i32) {
    %c0_i32 = arith.constant 0 : i32
    %c0_i32_0 = arith.constant 0 : i32
    %c0_i32_1 = arith.constant 0 : i32
    return %c0_i32, %c0_i32_0 : i32, i32
  }
  func.func @transform_5(%arg0: i32) -> i32 {
    %c0_i32 = arith.constant 0 : i32
    %c0_i32_0 = arith.constant 0 : i32
    return %c0_i32 : i32
  }
  func.func @transform_6(%arg0: i32) -> (i32, i32, i32) {
    %c0_i32 = arith.constant 0 : i32
    %c0_i32_0 = arith.constant 0 : i32
    %c0_i32_1 = arith.constant 0 : i32
    return %arg0, %c0_i32, %c0_i32_0 : i32, i32, i32
  }
}

</mosaic_0001>

<llo_original>
// kernel: tpu_custom_call.1
$region0: #{tpu_custom_call.1}
  #allocation0 [shape = 'u32[]', space=smem, size = 0x4, offset = 0x4, fixed_abs, tag = 'smem constant byte address 0x4 - core index']
  #allocation1 [shape = 'u32[144,128]{1,0:T(1,128)}', space=vmem, size = 0x12000, scoped, tag = 'internal scratch']
  #allocation2 [shape = 'f32[2,1,512]{2,1,0:T(1,128)}', space=vmem, size = 0x1000, scoped, tag = 'scratch operand']
  %s0 = inlined_call_operand.hbm [shape: f32[2,32,256], index: 0, kind: input, shape index: {}]
  %s1 = inlined_call_operand.vmem [shape: f32[2,32], index: 1, kind: input, shape index: {}]
  %s2 = inlined_call_operand.vmem [shape: f32[1,2], index: 2, kind: input, shape index: {}]
  %s3 = inlined_call_operand.vmem [shape: f32[32,2], index: 3, kind: input, shape index: {}]
  %s4 = inlined_call_operand.vmem [shape: f32[1,32], index: 4, kind: input, shape index: {}]
  %s5 = inlined_call_operand.vmem [shape: f32[99], index: 5, kind: input, shape index: {}]
  %s6 = inlined_call_operand.hbm [shape: f32[2,32,256], index: 6, kind: output, shape index: {}]
  %s7 = sld [smem:[#allocation0]]
  $region65: #{tpu_custom_call.1} parent=0
    _
  %s9 = ssub.s32 1, %s7
  %s10 = scalar_select 0, %s9, %s7
  $region1: #{tpu_custom_call.1} parent=0
    #allocation3 [shape = 'u8[65536]{0}', space=vmem, size = 0x10000, scoped, tag = 'input window, operand 0']
    #allocation4 [shape = 's32[2]{0}', space=sflag, size = 0x8, scoped, tag = 'scoped memory for tpu_custom_call.1']
    #allocation5 [shape = 's32[2]{0}', space=sflag, size = 0x8, scoped, tag = 'scoped memory for tpu_custom_call.1']
    #allocation6 [shape = 's32[2]{0}', space=sflag, size = 0x8, scoped, tag = 'scoped memory for tpu_custom_call.1']
    #allocation7 [shape = 'u8[512]{0}', space=smem, size = 0x200, scoped, tag = 'input window, operand 5, single buffered']
    #allocation8 [shape = 'u8[65536]{0}', space=vmem, size = 0x10000, scoped, tag = 'output window, operand 0']
    %11 = vsyncpa [#allocation4], 0
    %s12 = scalar_lea.sflag [#allocation4], 1
    %13 = vsyncpa %s12, 0
    %14 = vsyncpa [#allocation6], 0
    %15 = vsyncpa [#allocation5], 0
    %s16 = scalar_lea.sflag [#allocation5], 1
    %17 = vsyncpa %s16, 0
    loop: start=0, step=1, limit=4
    $region2: #{tpu_custom_call.1} parent=1 // loop_pre_header
      _
    $region3: #{tpu_custom_call.1} parent=1 // loop_header
      %s19 = sphi 0, %s23
      %p20 = scmp.ge.s32.totalorder %s19, 4
      %s29 = sphi 0, %s31
      %s32 = sphi 0, %s29
      %s33 = sphi 0, %s32
      %s49 = sphi 0, %s33
      %s53 = sphi 0, %s53
      %s55 = sphi 0, %s53
      %s56 = sphi 0, %s55
      %s70 = sphi 0, %s56
      %s74 = sphi 0, %s74
      %s76 = sphi 0, %s74
      %s77 = sphi 0, %s76
      %s91 = sphi 0, %s77
      %s95 = sphi 0, %s95
      %s97 = sphi 0, %s95
      %s98 = sphi 0, %s97
      %s112 = sphi 0, %s98
      %s116 = sphi 0, %s116
      %s118 = sphi 0, %s116
      %s119 = sphi 0, %s118
      %s133 = sphi 0, %s119
      %s137 = sphi 0, %s137
      %s139 = sphi 0, %s137
      %s140 = sphi 0, %s139
      %s154 = sphi 0, %s140
      %s160 = sphi 0, %s162
      %s163 = sphi 0, %s160
      %s164 = sphi 0, %s163
      %s180 = sphi 0, %s164
    $region4: #{tpu_custom_call.1} parent=1 // loop_header_branch
      %22 = sbr.rel (%p20) target = $region8
    $region5: #{tpu_custom_call.1} parent=1 // loop_body
      %s24 = ssub.s32 %s19, 1
      %s25 = ssub.s32 %s19, 2
      %s26 = sadd.s32 %s19, 1
      %s27 = ssub.s32 %s19, %s26
      %p28 = scmp.eq.s32.totalorder %s27, 0
      %s30 = sadd.s32 %s29, 1
      %s31 = scalar_select %p28, %s29, %s30
      %p34 = pneg %p28
      %p35 = scmp.eq.s32.totalorder %s19, 1
      %p36 = por %p34, %p35
      %p37 = scmp.ne.s32.totalorder %s29, %s32
      %p38 = scmp.eq.s32.totalorder %s19, 0
      %p39 = por %p37, %p38
      %p40 = scmp.ne.s32.totalorder %s29, %s32
      %p41 = scmp.eq.s32.totalorder %s24, 1
      %p42 = por %p40, %p41
      %p43 = scmp.ne.s32.totalorder %s32, %s33
      %p44 = scmp.eq.s32.totalorder %s24, 0
      %p45 = por %p43, %p44
      %p46 = scmp.ne.s32.totalorder %s32, %s33
      %p47 = scmp.eq.s32.totalorder %s25, 1
      %p48 = por %p46, %p47
      %p50 = scmp.ne.s32.totalorder %s33, %s49
      %p51 = scmp.eq.s32.totalorder %s25, 0
      %p52 = por %p50, %p51
      %s54 = sadd.s32 %s53, 1
      %p57 = scmp.eq.s32.totalorder %s19, 1
      %p58 = scmp.ne.s32.totalorder %s53, %s55
      %p59 = scmp.eq.s32.totalorder %s19, 0
      %p60 = por %p58, %p59
      %p61 = scmp.ne.s32.totalorder %s53, %s55
      %p62 = scmp.eq.s32.totalorder %s24, 1
      %p63 = por %p61, %p62
      %p64 = scmp.ne.s32.totalorder %s55, %s56
      %p65 = scmp.eq.s32.totalorder %s24, 0
      %p66 = por %p64, %p65
      %p67 = scmp.ne.s32.totalorder %s55, %s56
      %p68 = scmp.eq.s32.totalorder %s25, 1
      %p69 = por %p67, %p68
      %p71 = scmp.ne.s32.totalorder %s56, %s70
      %p72 = scmp.eq.s32.totalorder %s25, 0
      %p73 = por %p71, %p72
      %s75 = sadd.s32 %s74, 1
      %p78 = scmp.eq.s32.totalorder %s19, 1
      %p79 = scmp.ne.s32.totalorder %s74, %s76
      %p80 = scmp.eq.s32.totalorder %s19, 0
      %p81 = por %p79, %p80
      %p82 = scmp.ne.s32.totalorder %s74, %s76
      %p83 = scmp.eq.s32.totalorder %s24, 1
      %p84 = por %p82, %p83
      %p85 = scmp.ne.s32.totalorder %s76, %s77
      %p86 = scmp.eq.s32.totalorder %s24, 0
      %p87 = por %p85, %p86
      %p88 = scmp.ne.s32.totalorder %s76, %s77
      %p89 = scmp.eq.s32.totalorder %s25, 1
      %p90 = por %p88, %p89
      %p92 = scmp.ne.s32.totalorder %s77, %s91
      %p93 = scmp.eq.s32.totalorder %s25, 0
      %p94 = por %p92, %p93
      %s96 = sadd.s32 %s95, 1
      %p99 = scmp.eq.s32.totalorder %s19, 1
      %p100 = scmp.ne.s32.totalorder %s95, %s97
      %p101 = scmp.eq.s32.totalorder %s19, 0
      %p102 = por %p100, %p101
      %p103 = scmp.ne.s32.totalorder %s95, %s97
      %p104 = scmp.eq.s32.totalorder %s24, 1
      %p105 = por %p103, %p104
      %p106 = scmp.ne.s32.totalorder %s97, %s98
      %p107 = scmp.eq.s32.totalorder %s24, 0
      %p108 = por %p106, %p107
      %p109 = scmp.ne.s32.totalorder %s97, %s98
      %p110 = scmp.eq.s32.totalorder %s25, 1
      %p111 = por %p109, %p110
      %p113 = scmp.ne.s32.totalorder %s98, %s112
      %p114 = scmp.eq.s32.totalorder %s25, 0
      %p115 = por %p113, %p114
      %s117 = sadd.s32 %s116, 1
      %p120 = scmp.eq.s32.totalorder %s19, 1
      %p121 = scmp.ne.s32.totalorder %s116, %s118
      %p122 = scmp.eq.s32.totalorder %s19, 0
      %p123 = por %p121, %p122
      %p124 = scmp.ne.s32.totalorder %s116, %s118
      %p125 = scmp.eq.s32.totalorder %s24, 1
      %p126 = por %p124, %p125
      %p127 = scmp.ne.s32.totalorder %s118, %s119
      %p128 = scmp.eq.s32.totalorder %s24, 0
      %p129 = por %p127, %p128
      %p130 = scmp.ne.s32.totalorder %s118, %s119
      %p131 = scmp.eq.s32.totalorder %s25, 1
      %p132 = por %p130, %p131
      %p134 = scmp.ne.s32.totalorder %s119, %s133
      %p135 = scmp.eq.s32.totalorder %s25, 0
      %p136 = por %p134, %p135
      %s138 = sadd.s32 %s137, 1
      %p141 = scmp.eq.s32.totalorder %s19, 1
      %p142 = scmp.ne.s32.totalorder %s137, %s139
      %p143 = scmp.eq.s32.totalorder %s19, 0
      %p144 = por %p142, %p143
      %p145 = scmp.ne.s32.totalorder %s137, %s139
      %p146 = scmp.eq.s32.totalorder %s24, 1
      %p147 = por %p145, %p146
      %p148 = scmp.ne.s32.totalorder %s139, %s140
      %p149 = scmp.eq.s32.totalorder %s24, 0
      %p150 = por %p148, %p149
      %p151 = scmp.ne.s32.totalorder %s139, %s140
      %p152 = scmp.eq.s32.totalorder %s25, 1
      %p153 = por %p151, %p152
      %p155 = scmp.ne.s32.totalorder %s140, %s154
      %p156 = scmp.eq.s32.totalorder %s25, 0
      %p157 = por %p155, %p156
      %s158 = ssub.s32 %s19, %s26
      %p159 = scmp.eq.s32.totalorder %s158, 0
      %s161 = sadd.s32 %s160, 1
      %s162 = scalar_select %p159, %s160, %s161
      %p165 = pneg %p159
      %p166 = scmp.eq.s32.totalorder %s19, 1
      %p167 = por %p165, %p166
      %p168 = scmp.ne.s32.totalorder %s160, %s163
      %p169 = scmp.eq.s32.totalorder %s19, 0
      %p170 = por %p168, %p169
      %p171 = scmp.ne.s32.totalorder %s160, %s163
      %p172 = scmp.eq.s32.totalorder %s24, 1
      %p173 = por %p171, %p172
      %p174 = scmp.ne.s32.totalorder %s163, %s164
      %p175 = scmp.eq.s32.totalorder %s24, 0
      %p176 = por %p174, %p175
      %p177 = scmp.ne.s32.totalorder %s163, %s164
      %p178 = scmp.eq.s32.totalorder %s25, 1
      %p179 = por %p177, %p178
      %p181 = scmp.ne.s32.totalorder %s164, %s180
      %p182 = scmp.eq.s32.totalorder %s25, 0
      %p183 = por %p181, %p182
      %p184 = scmp.le.s32.totalorder 1, %s19
      %p185 = scmp.lt.s32.totalorder %s19, 3
      %p186 = pnand %p184, %p185
      %p187 = pneg %p186
      // Predicated region
      $region9: #{tpu_custom_call.1} parent=5 // pred_check
        _
      $region10: #{tpu_custom_call.1} parent=5 // pred_check_branch
        %189 = sbr.rel (%p186) target = $region12
      $region11: #{tpu_custom_call.1} parent=5 // pred_region
        %s190 = ssub.s32 %s19, 1
        // Predicated region
        $region13: #{tpu_custom_call.1} parent=11 // pred_check
          %p191 = pneg %p66
        $region14: #{tpu_custom_call.1} parent=11 // pred_check_branch
          %193 = sbr.rel (%p191) target = $region16
        $region15: #{tpu_custom_call.1} parent=11 // pred_region
          _
        $region16: #{tpu_custom_call.1} parent=11 // pred_fallthru
          _
        // Predicated region
        $region17: #{tpu_custom_call.1} parent=11 // pred_check
          %p194 = pneg %p87
        $region18: #{tpu_custom_call.1} parent=11 // pred_check_branch
          %196 = sbr.rel (%p194) target = $region20
        $region19: #{tpu_custom_call.1} parent=11 // pred_region
          _
        $region20: #{tpu_custom_call.1} parent=11 // pred_fallthru
          _
        // Predicated region
        $region21: #{tpu_custom_call.1} parent=11 // pred_check
          %p197 = pneg %p108
        $region22: #{tpu_custom_call.1} parent=11 // pred_check_branch
          %199 = sbr.rel (%p197) target = $region24
        $region23: #{tpu_custom_call.1} parent=11 // pred_region
          _
        $region24: #{tpu_custom_call.1} parent=11 // pred_fallthru
          _
        // Predicated region
        $region25: #{tpu_custom_call.1} parent=11 // pred_check
          %p200 = pneg %p129
        $region26: #{tpu_custom_call.1} parent=11 // pred_check_branch
          %202 = sbr.rel (%p200) target = $region28
        $region27: #{tpu_custom_call.1} parent=11 // pred_region
          _
        $region28: #{tpu_custom_call.1} parent=11 // pred_fallthru
          _
        // Predicated region
        $region29: #{tpu_custom_call.1} parent=11 // pred_check
          %p203 = pneg %p150
        $region30: #{tpu_custom_call.1} parent=11 // pred_check_branch
          %205 = sbr.rel (%p203) target = $region32
        $region31: #{tpu_custom_call.1} parent=11 // pred_region
          %s207 = ssub.s32 16, 16
          %208 = vsyncadd [#allocation6], %s207
          %s210 = sshll.u32 %s5, 4
          %s211 = int_to_ptr.vmem [resolvable:$true] %s210
          %213 = dma.vmem_to_smem %s211, 16, [#allocation7], [#allocation6]
        $region32: #{tpu_custom_call.1} parent=11 // pred_fallthru
          _
      $region12: #{tpu_custom_call.1} parent=5 // pred_fallthru
        _
      %p214 = scmp.lt.s32.totalorder %s19, 2
      // Predicated region
      $region33: #{tpu_custom_call.1} parent=5 // pred_check
        %p215 = pneg %p214
      $region34: #{tpu_custom_call.1} parent=5 // pred_check_branch
        %217 = sbr.rel (%p215) target = $region36
      $region35: #{tpu_custom_call.1} parent=5 // pred_region
        // Predicated region
        $region37: #{tpu_custom_call.1} parent=35 // pred_check
          %p218 = pneg %p39
        $region38: #{tpu_custom_call.1} parent=35 // pred_check_branch
          %220 = sbr.rel (%p218) target = $region40
        $region39: #{tpu_custom_call.1} parent=35 // pred_region
          %s221 = sand.u32 %s29, 1
          %s222 = scalar_lea.sflag [#allocation4], %s221
          %s223 = sand.u32 %s29, 1
          %s224 = smul.addr %s223, 64
          %s225 = scalar_lea.vmem [#allocation3], %s224
          %s227 = ssub.s32 1024, 1024
          %228 = vsyncadd %s222, %s227
          %s229 = smul.addr %s19, 8
          %s230 = smul.addr %s229, 128
          %s231 = scalar_lea.hbm %s0, %s230
          %s232 = sshll.u32 %s225, 4
          %s233 = int_to_ptr.vmem [resolvable:$true] %s232
          %238 = dma.hbm_to_vmem [thread:$0]  %s231, 1024, %s233, %s222, 256, 256, 16
        $region40: #{tpu_custom_call.1} parent=35 // pred_fallthru
          _
      $region36: #{tpu_custom_call.1} parent=5 // pred_fallthru
        _
      %p239 = scmp.le.s32.totalorder 1, %s19
      %p240 = scmp.lt.s32.totalorder %s19, 3
      %p241 = pnand %p239, %p240
      %p242 = pneg %p241
      // Predicated region
      $region41: #{tpu_custom_call.1} parent=5 // pred_check
        _
      $region42: #{tpu_custom_call.1} parent=5 // pred_check_branch
        %244 = sbr.rel (%p241) target = $region44
      $region43: #{tpu_custom_call.1} parent=5 // pred_region
        %s245 = ssub.s32 %s19, 1
        %s246 = sand.u32 %s32, 1
        %s247 = scalar_lea.sflag [#allocation4], %s246
        %s248 = sand.u32 %s32, 1
        %s249 = smul.addr %s248, 64
        %s250 = scalar_lea.vmem [#allocation3], %s249
        // Predicated region
        $region45: #{tpu_custom_call.1} parent=43 // pred_check
          %p251 = pneg %p45
        $region46: #{tpu_custom_call.1} parent=43 // pred_check_branch
          %253 = sbr.rel (%p251) target = $region48
        $region47: #{tpu_custom_call.1} parent=43 // pred_region
          %254 = dma.done %s247, 1024
        $region48: #{tpu_custom_call.1} parent=43 // pred_fallthru
          _
        // Predicated region
        $region49: #{tpu_custom_call.1} parent=43 // pred_check
          %p255 = pneg %p150
        $region50: #{tpu_custom_call.1} parent=43 // pred_check_branch
          %257 = sbr.rel (%p255) target = $region52
        $region51: #{tpu_custom_call.1} parent=43 // pred_region
          %258 = dma.done [#allocation6], 16
        $region52: #{tpu_custom_call.1} parent=43 // pred_fallthru
          _
        %259 = sfence
        %s260 = sand.u32 %s32, 1
        %s261 = scalar_lea.sflag [#allocation4], %s260
        %s262 = sand.u32 %s32, 1
        %s263 = smul.addr %s262, 64
        %s264 = scalar_lea.vmem [#allocation3], %s263
        %p265 = pneg %p45
        %p266 = pneg %p42
        %p267 = pneg %p66
        %p268 = pneg %p63
        %p269 = pneg %p87
        %p270 = pneg %p84
        %p271 = pneg %p108
        %p272 = pneg %p105
        %p273 = pneg %p129
        %p274 = pneg %p126
        %p275 = pneg %p150
        %p276 = pneg %p147
        %p277 = pneg %p176
        %p278 = pneg %p173
        %s279 = sand.u32 %s163, 1
        %s280 = scalar_lea.sflag [#allocation5], %s279
        %s281 = sand.u32 %s163, 1
        %s282 = smul.addr %s281, 64
        %s283 = scalar_lea.vmem [#allocation8], %s282
        %v284 = vld [vmem:[%s250] sm:$0xff]
        %v285 = vld [vmem:[%s250 + $0x8] sm:$0xff]
        %v286 = vld [vmem:[%s250 + $0x10] sm:$0xff]
        %v287 = vld [vmem:[%s250 + $0x18] sm:$0xff]
        %v288 = vld [vmem:[%s250 + $0x20] sm:$0xff]
        %v289 = vld [vmem:[%s250 + $0x28] sm:$0xff]
        %v290 = vld [vmem:[%s250 + $0x30] sm:$0xff]
        %v291 = vld [vmem:[%s250 + $0x38] sm:$0xff]
        %v292 = vadd.f32 %v284, %v285
        %293 = vadd.xlane.f32.xlu0 %v292
        %v294 = vpop.xlane.xlu0 %293
        %v295 = vadd.f32 %v286, %v287
        %296 = vadd.xlane.f32.xlu0 %v295
        %v297 = vpop.xlane.xlu0 %296
        %v298 = vadd.f32 %v288, %v289
        %299 = vadd.xlane.f32.xlu0 %v298
        %v300 = vpop.xlane.xlu0 %299
        %v301 = vadd.f32 %v290, %v291
        %302 = vadd.xlane.f32.xlu0 %v301
        %v303 = vpop.xlane.xlu0 %302
        %v304 = vrcp.pop 256.0
        %v305 = vmul.f32 %v294, %v304
        %v306 = vmul.f32 %v297, %v304
        %v307 = vmul.f32 %v300, %v304
        %v308 = vmul.f32 %v303, %v304
        %v309 = vmax.f32 %v284, %v285
        %310 = vmax.xlane.f32.xlu0 %v309
        %v311 = vpop.xlane.xlu0 %310
        %v312 = vmax.f32 %v286, %v287
        %313 = vmax.xlane.f32.xlu0 %v312
        %v314 = vpop.xlane.xlu0 %313
        %v315 = vmax.f32 %v288, %v289
        %316 = vmax.xlane.f32.xlu0 %v315
        %v317 = vpop.xlane.xlu0 %316
        %v318 = vmax.f32 %v290, %v291
        %319 = vmax.xlane.f32.xlu0 %v318
        %v320 = vpop.xlane.xlu0 %319
        %v325 = vlaneseq
        %v326 = vand.u32 %v325, 127
        %v327 = vlaneseq
        %v328 = vshrl.u32 %v327, 7
        %v329 = vsub.s32 %v326, %v328
        %v330 = vrot.slane %v305, %v329
        %v331 = vadd.s32 %v326, 4294967288
        %v332 = vlaneseq
        %v333 = vshrl.u32 %v332, 7
        %v334 = vsub.s32 %v331, %v333
        %v335 = vrot.slane %v306, %v334
        %vm336 = vcmask 130112
        %v337 = vsel %vm336, %v335, %v330
        %v338 = vadd.s32 %v326, 4294967280
        %v339 = vlaneseq
        %v340 = vshrl.u32 %v339, 7
        %v341 = vsub.s32 %v338, %v340
        %v342 = vrot.slane %v307, %v341
        %vm343 = vcmask 195712
        %v344 = vsel %vm343, %v342, %v337
        %v345 = vadd.s32 %v326, 4294967272
        %v346 = vlaneseq
        %v347 = vshrl.u32 %v346, 7
        %v348 = vsub.s32 %v345, %v347
        %v349 = vrot.slane %v308, %v348
        %vm350 = vcmask 261312
        %v351 = vsel %vm350, %v349, %v344
        %v357 = vlaneseq
        %v358 = vshrl.u32 %v357, 7
        %v359 = vsub.s32 %v326, %v358
        %v360 = vrot.slane %v311, %v359
        %v361 = vlaneseq
        %v362 = vshrl.u32 %v361, 7
        %v363 = vsub.s32 %v331, %v362
        %v364 = vrot.slane %v314, %v363
        %v365 = vsel %vm336, %v364, %v360
        %v366 = vlaneseq
        %v367 = vshrl.u32 %v366, 7
        %v368 = vsub.s32 %v338, %v367
        %v369 = vrot.slane %v317, %v368
        %v370 = vsel %vm343, %v369, %v365
        %v371 = vlaneseq
        %v372 = vshrl.u32 %v371, 7
        %v373 = vsub.s32 %v345, %v372
        %v374 = vrot.slane %v320, %v373
        %v375 = vsel %vm350, %v374, %v370
        %vm377 = vcmask 1040384
        %v378 = vsel %vm377, %v351, %v375
        %v379 = vld [vmem:[%s1] sm:$0x3]
        %v380 = vld [vmem:[%s2] sm:$0x1]
        %v382 = vlaneseq
        %v383 = vshrl.u32 %v382, 7
        %v384 = vsub.s32 0, %v383
        %v385 = vrot.slane %v380, %v384
        %vm387 = vcmask 261120
        %v389 = vsel %vm387, %v378, 0
        %v392 = vsel %vm387, %v379, 0
        %394 = vmatprep.subr.mxu0 0.0
        %395 = vmatpush1.xpose.msra.mxu0 0.0
        %396 = vmatprep.subr.mxu0 0.0
        %397 = vmatpush1.xpose.msra.mxu0 0.0
        %398 = vmatprep.subr.mxu0 0.0
        %399 = vmatpush1.xpose.msra.mxu0 0.0
        %400 = vmatprep.subr.mxu0 0.0
        %401 = vmatpush1.xpose.msra.mxu0 0.0
        %402 = vmatprep.subr.mxu0 0.0
        %403 = vmatpush1.xpose.msra.mxu0 0.0
        %404 = vmatprep.subr.mxu0 0.0
        %405 = vmatpush1.xpose.msra.mxu0 0.0
        %406 = vmatprep.subr.mxu0 0.0
        %407 = vmatpush1.xpose.msra.mxu0 0.0
        %408 = vmatprep.subr.mxu0 0.0
        %409 = vmatpush1.xpose.msra.mxu0 0.0
        %410 = vmatprep.subr.mxu0 0.0
        %411 = vmatpush1.xpose.msra.mxu0 0.0
        %412 = vmatprep.subr.mxu0 0.0
        %413 = vmatpush1.xpose.msra.mxu0 0.0
        %414 = vmatprep.subr.mxu0 0.0
        %415 = vmatpush1.xpose.msra.mxu0 0.0
        %416 = vmatprep.subr.mxu0 0.0
        %417 = vmatpush1.xpose.msra.mxu0 0.0
        %418 = vmatprep.subr.mxu0 0.0
        %419 = vmatpush1.xpose.msra.mxu0 0.0
        %420 = vmatprep.subr.mxu0 0.0
        %421 = vmatpush1.xpose.msra.mxu0 0.0
        %422 = vmatprep.subr.mxu0 0.0
        %423 = vmatpush1.xpose.msra.mxu0 0.0
        %424 = vmatprep.subr.mxu0 0.0
        %425 = vmatpush1.xpose.msra.mxu0 %v392
        %426 = vmatprep.subr.mxu0 0.0
        %427 = vmatpush2.xpose.msra.mxu0 0.0
        %428 = vmatprep.subr.mxu0 0.0
        %429 = vmatpush2.xpose.msra.mxu0 0.0
        %430 = vmatprep.subr.mxu0 0.0
        %431 = vmatpush2.xpose.msra.mxu0 0.0
        %432 = vmatprep.subr.mxu0 0.0
        %433 = vmatpush2.xpose.msra.mxu0 0.0
        %434 = vmatprep.subr.mxu0 0.0
        %435 = vmatpush2.xpose.msra.mxu0 0.0
        %436 = vmatprep.subr.mxu0 0.0
        %437 = vmatpush2.xpose.msra.mxu0 0.0
        %438 = vmatprep.subr.mxu0 0.0
        %439 = vmatpush2.xpose.msra.mxu0 0.0
        %440 = vmatprep.subr.mxu0 0.0
        %441 = vmatpush2.xpose.msra.mxu0 0.0
        %442 = vmatprep.subr.mxu0 0.0
        %443 = vmatpush2.xpose.msra.mxu0 0.0
        %444 = vmatprep.subr.mxu0 0.0
        %445 = vmatpush2.xpose.msra.mxu0 0.0
        %446 = vmatprep.subr.mxu0 0.0
        %447 = vmatpush2.xpose.msra.mxu0 0.0
        %448 = vmatprep.subr.mxu0 0.0
        %449 = vmatpush2.xpose.msra.mxu0 0.0
        %450 = vmatprep.subr.mxu0 0.0
        %451 = vmatpush2.xpose.msra.mxu0 0.0
        %452 = vmatprep.subr.mxu0 0.0
        %453 = vmatpush2.xpose.msra.mxu0 0.0
        %454 = vmatprep.subr.mxu0 0.0
        %455 = vmatpush2.xpose.msra.mxu0 0.0
        %456 = vmatprep.subr.mxu0 0.0
        %457 = vmatpush2.xpose.msra.mxu0 0.0
        %458 = vmatprep.mubr.f32.mxu0 0.0
        %459 = vmatmul.mubr.f32.gmra.mxu0 %v389
        %v460 = vpop.f32.mrf.mxu0
        %v461 = vadd.f32 %v385, %v460
        %v462 = vpop.f32.mrf.mxu0
        %463 = vdwg.mxu0
        %v464 = vmax.f32 %v461, 0.0
        %v465 = vld [vmem:[%s3] sm:$0xff]
        %v466 = vld [vmem:[%s3 + $0x8] sm:$0xff]
        %v467 = vld [vmem:[%s3 + $0x10] sm:$0xff]
        %v468 = vld [vmem:[%s3 + $0x18] sm:$0xff]
        %v469 = vld [vmem:[%s4] sm:$0x1]
        %v471 = vlaneseq
        %v472 = vshrl.u32 %v471, 7
        %v473 = vsub.s32 0, %v472
        %v474 = vrot.slane %v469, %v473
        %vm476 = vcmask 15360
        %v478 = vsel %vm476, %v464, 0
        %v481 = vsel %vm476, %v465, 0
        %v484 = vsel %vm476, %v466, 0
        %v487 = vsel %vm476, %v467, 0
        %v490 = vsel %vm476, %v468, 0
        %492 = vmatprep.subr.mxu0 0.0
        %493 = vmatpush1.xpose.msra.mxu0 0.0
        %494 = vmatprep.subr.mxu0 0.0
        %495 = vmatpush1.xpose.msra.mxu0 0.0
        %496 = vmatprep.subr.mxu0 0.0
        %497 = vmatpush1.xpose.msra.mxu0 0.0
        %498 = vmatprep.subr.mxu0 0.0
        %499 = vmatpush1.xpose.msra.mxu0 0.0
        %500 = vmatprep.subr.mxu0 0.0
        %501 = vmatpush1.xpose.msra.mxu0 0.0
        %502 = vmatprep.subr.mxu0 0.0
        %503 = vmatpush1.xpose.msra.mxu0 0.0
        %504 = vmatprep.subr.mxu0 0.0
        %505 = vmatpush1.xpose.msra.mxu0 0.0
        %506 = vmatprep.subr.mxu0 0.0
        %507 = vmatpush1.xpose.msra.mxu0 0.0
        %508 = vmatprep.subr.mxu0 0.0
        %509 = vmatpush1.xpose.msra.mxu0 0.0
        %510 = vmatprep.subr.mxu0 0.0
        %511 = vmatpush1.xpose.msra.mxu0 0.0
        %512 = vmatprep.subr.mxu0 0.0
        %513 = vmatpush1.xpose.msra.mxu0 0.0
        %514 = vmatprep.subr.mxu0 0.0
        %515 = vmatpush1.xpose.msra.mxu0 0.0
        %516 = vmatprep.subr.mxu0 0.0
        %517 = vmatpush1.xpose.msra.mxu0 %v490
        %518 = vmatprep.subr.mxu0 0.0
        %519 = vmatpush1.xpose.msra.mxu0 %v487
        %520 = vmatprep.subr.mxu0 0.0
        %521 = vmatpush1.xpose.msra.mxu0 %v484
        %522 = vmatprep.subr.mxu0 0.0
        %523 = vmatpush1.xpose.msra.mxu0 %v481
        %524 = vmatprep.subr.mxu0 0.0
        %525 = vmatpush2.xpose.msra.mxu0 0.0
        %526 = vmatprep.subr.mxu0 0.0
        %527 = vmatpush2.xpose.msra.mxu0 0.0
        %528 = vmatprep.subr.mxu0 0.0
        %529 = vmatpush2.xpose.msra.mxu0 0.0
        %530 = vmatprep.subr.mxu0 0.0
        %531 = vmatpush2.xpose.msra.mxu0 0.0
        %532 = vmatprep.subr.mxu0 0.0
        %533 = vmatpush2.xpose.msra.mxu0 0.0
        %534 = vmatprep.subr.mxu0 0.0
        %535 = vmatpush2.xpose.msra.mxu0 0.0
        %536 = vmatprep.subr.mxu0 0.0
        %537 = vmatpush2.xpose.msra.mxu0 0.0
        %538 = vmatprep.subr.mxu0 0.0
        %539 = vmatpush2.xpose.msra.mxu0 0.0
        %540 = vmatprep.subr.mxu0 0.0
        %541 = vmatpush2.xpose.msra.mxu0 0.0
        %542 = vmatprep.subr.mxu0 0.0
        %543 = vmatpush2.xpose.msra.mxu0 0.0
        %544 = vmatprep.subr.mxu0 0.0
        %545 = vmatpush2.xpose.msra.mxu0 0.0
        %546 = vmatprep.subr.mxu0 0.0
        %547 = vmatpush2.xpose.msra.mxu0 0.0
        %548 = vmatprep.subr.mxu0 0.0
        %549 = vmatpush2.xpose.msra.mxu0 0.0
        %550 = vmatprep.subr.mxu0 0.0
        %551 = vmatpush2.xpose.msra.mxu0 0.0
        %552 = vmatprep.subr.mxu0 0.0
        %553 = vmatpush2.xpose.msra.mxu0 0.0
        %554 = vmatprep.subr.mxu0 0.0
        %555 = vmatpush2.xpose.msra.mxu0 0.0
        %556 = vmatprep.mubr.f32.mxu0 0.0
        %557 = vmatmul.mubr.f32.gmra.mxu0 %v478
        %v558 = vpop.f32.mrf.mxu0
        %v559 = vadd.f32 %v474, %v558
        %v560 = vpop.f32.mrf.mxu0
        %561 = vdwg.mxu0
        %v563 = vrot.slane %v559, 1
        %v565 = vadd.f32 %v559, %v563
        %v566 = vxor.u32 %v565, 2147483648
        %v567 = vmul.f32 %v566, 1.442695
        %v568 = vpow.pop %v567
        %v569 = vadd.f32 %v568, 1.0
        %v570 = vrcp.pop %v569
        %v571 = vmul.f32 1.0, %v570
        %v572 = vlaneseq
        %v573 = vshrl.u32 %v572, 7
        %v574 = vsub.s32 0, %v573
        %v575 = vrot.slane %v571, %v574
        %577 = vbcast.lane.b32.xlu0 %v575, 256
        %v578 = vpop.permute.xlu0 %577
        %s580 = sor.u32 256, 8
        %581 = vbcast.lane.b32.xlu0 %v575, %s580
        %v582 = vpop.permute.xlu0 %581
        %s584 = sor.u32 256, 16
        %585 = vbcast.lane.b32.xlu0 %v575, %s584
        %v586 = vpop.permute.xlu0 %585
        %s588 = sor.u32 256, 24
        %589 = vbcast.lane.b32.xlu0 %v575, %s588
        %v590 = vpop.permute.xlu0 %589
        %v591 = vmul.f32 %v284, %v578
        %v592 = vmul.f32 %v285, %v578
        %v593 = vmul.f32 %v286, %v582
        %v594 = vmul.f32 %v287, %v582
        %v595 = vmul.f32 %v288, %v586
        %v596 = vmul.f32 %v289, %v586
        %v597 = vmul.f32 %v290, %v590
        %v598 = vmul.f32 %v291, %v590
        %v599 = vmax.f32 %v591, %v595
        %v600 = vmax.f32 %v593, %v597
        %v601 = vmax.f32 %v599, %v600
        %v602 = vrot.slane %v601, 4
        %v603 = vmax.f32 %v601, %v602
        %v604 = vrot.slane %v603, 2
        %v605 = vmax.f32 %v603, %v604
        %v606 = vrot.slane %v605, 1
        %v607 = vmax.f32 %v605, %v606
        %v608 = vmax.f32 %v592, %v596
        %v609 = vmax.f32 %v594, %v598
        %v610 = vmax.f32 %v608, %v609
        %v611 = vrot.slane %v610, 4
        %v612 = vmax.f32 %v610, %v611
        %v613 = vrot.slane %v612, 2
        %v614 = vmax.f32 %v612, %v613
        %v615 = vrot.slane %v614, 1
        %v616 = vmax.f32 %v614, %v615
        %v617 = vadd.f32 %v591, %v593
        %v618 = vadd.f32 %v617, %v595
        %v619 = vadd.f32 %v618, %v597
        %v620 = vrot.slane %v619, 4
        %v621 = vadd.f32 %v619, %v620
        %v622 = vrot.slane %v621, 2
        %v623 = vadd.f32 %v621, %v622
        %v624 = vrot.slane %v623, 1
        %v625 = vadd.f32 %v623, %v624
        %v626 = vadd.f32 %v592, %v594
        %v627 = vadd.f32 %v626, %v596
        %v628 = vadd.f32 %v627, %v598
        %v629 = vrot.slane %v628, 4
        %v630 = vadd.f32 %v628, %v629
        %v631 = vrot.slane %v630, 2
        %v632 = vadd.f32 %v630, %v631
        %v633 = vrot.slane %v632, 1
        %v634 = vadd.f32 %v632, %v633
        %v635 = vrcp.pop 32.0
        %v636 = vmul.f32 %v625, %v635
        %v637 = vmul.f32 %v634, %v635
        %v638 = vlaneseq
        %vm639 = vcmp.ge.s32.totalorder %v638, 0
        %vm640 = vcmp.lt.s32.totalorder %v638, 128
        %vm641 = vmand %vm639, %vm640
        %642 = vst.msk [vmem:[#allocation2] sm:$0x1] %vm641, 0.0
        %643 = vst.msk [vmem:[#allocation2 + $0x4] sm:$0x1] %vm641, 0.0
        %644 = vst.msk [vmem:[#allocation2 + $0x3] sm:$0x1] %vm641, 0.0
        %645 = vst.msk [vmem:[#allocation2 + $0x7] sm:$0x1] %vm641, 0.0
        %v650 = vcombine.low %v607, %v616
        %v652 = vunpack.c.l.s4 1966171168
        %v653 = vunpack.c.0.s8 %v652
        %v654 = vlaneseq
        %v655 = vshrl.u32 %v654, 7
        %v656 = vsub.s32 %v653, %v655
        %v657 = vrot.slane %v650, %v656
        %v659 = vunpack.c.l.s4 1966171168
        %v660 = vunpack.c.0.s8 %v659
        %v661 = vlaneseq
        %v662 = vshrl.u32 %v661, 7
        %v663 = vsub.s32 %v660, %v662
        %v664 = vrot.slane %v657, %v663
        %v665 = vcombine.low %v636, %v637
        %v667 = vunpack.c.l.s4 1966171168
        %v668 = vunpack.c.0.s8 %v667
        %v669 = vlaneseq
        %v670 = vshrl.u32 %v669, 7
        %v671 = vsub.s32 %v668, %v670
        %v672 = vrot.slane %v665, %v671
        %v674 = vunpack.c.l.s4 1966171168
        %v675 = vunpack.c.0.s8 %v674
        %v676 = vlaneseq
        %v677 = vshrl.u32 %v676, 7
        %v678 = vsub.s32 %v675, %v677
        %v679 = vrot.slane %v672, %v678
        %vm682 = vcmp.lt.s32.totalorder %v638, 256
        %vm683 = vmand %vm639, %vm682
        %684 = vst.msk [vmem:[#allocation2 + $0x1] sm:$0x3] %vm683, %v664
        %685 = vst.msk [vmem:[#allocation2 + $0x5] sm:$0x3] %vm683, %v679
        %v686 = vadd.s32 %v326, 128
        %vm687 = vcmp.lt.s32.totalorder %v326, 0
        %v688 = vsub.s32 0, %v326
        %v689 = vsel %vm687, %v688, %v326
        %v690 = vshrl.u32 %v689, 4
        %v691 = vand.u32 %v689, 15
        %v692 = vsub.s32 0, %v691
        %v693 = vsel %vm687, %v692, %v691
        %vm694 = vcmp.lt.s32.totalorder %v686, 0
        %v695 = vsub.s32 0, %v686
        %v696 = vsel %vm694, %v695, %v686
        %v697 = vshrl.u32 %v696, 4
        %v698 = vand.u32 %v696, 15
        %v699 = vsub.s32 0, %v698
        %v700 = vsel %vm694, %v699, %v698
        %vm701 = vcmp.ne.s32.totalorder %v693, 0
        %vm702 = vcmp.ne.s32.totalorder %v700, 0
        %vm703 = vcmp.lt.s32.totalorder %v693, 0
        %vm704 = vcmp.lt.s32.totalorder %v700, 0
        %vm705 = vmand %vm703, %vm701
        %vm706 = vmand %vm704, %vm702
        %v707 = vadd.s32 %v693, 16
        %v708 = vadd.s32 %v700, 16
        %v709 = vsel %vm705, %v707, %v693
        %v710 = vsel %vm706, %v708, %v700
        %v711 = vadd.s32 %v709, 4294967293
        %v712 = vadd.s32 %v710, 4294967293
        %vm713 = vcmp.ge.s32.totalorder %v711, 0
        %vm714 = vcmp.ge.s32.totalorder %v712, 0
        %vm715 = vcmp.lt.s32.totalorder %v711, 16
        %vm716 = vcmp.lt.s32.totalorder %v712, 16
        %vm717 = vmand %vm713, %vm715
        %vm718 = vmand %vm714, %vm716
        %v719 = vadd.s32 %v709, 4294967294
        %v720 = vadd.s32 %v710, 4294967294
        %vm721 = vcmp.ge.s32.totalorder %v719, 0
        %vm722 = vcmp.ge.s32.totalorder %v720, 0
        %vm723 = vcmp.lt.s32.totalorder %v719, 16
        %vm724 = vcmp.lt.s32.totalorder %v720, 16
        %vm725 = vmand %vm721, %vm723
        %vm726 = vmand %vm722, %vm724
        %v727 = vadd.s32 %v709, 4294967295
        %v728 = vadd.s32 %v710, 4294967295
        %vm729 = vcmp.ge.s32.totalorder %v727, 0
        %vm730 = vcmp.ge.s32.totalorder %v728, 0
        %vm731 = vcmp.lt.s32.totalorder %v727, 16
        %vm732 = vcmp.lt.s32.totalorder %v728, 16
        %vm733 = vmand %vm729, %vm731
        %vm734 = vmand %vm730, %vm732
        %vm735 = vcmp.ge.s32.totalorder %v709, 0
        %vm736 = vcmp.ge.s32.totalorder %v710, 0
        %vm737 = vcmp.lt.s32.totalorder %v709, 16
        %vm738 = vcmp.lt.s32.totalorder %v710, 16
        %vm739 = vmand %vm735, %vm737
        %vm740 = vmand %vm736, %vm738
        %v741 = vadd.s32 %v709, 1
        %v742 = vadd.s32 %v710, 1
        %vm743 = vcmp.ge.s32.totalorder %v741, 0
        %vm744 = vcmp.ge.s32.totalorder %v742, 0
        %vm745 = vcmp.lt.s32.totalorder %v741, 16
        %vm746 = vcmp.lt.s32.totalorder %v742, 16
        %vm747 = vmand %vm743, %vm745
        %vm748 = vmand %vm744, %vm746
        %v749 = vadd.s32 %v709, 2
        %v750 = vadd.s32 %v710, 2
        %vm751 = vcmp.ge.s32.totalorder %v749, 0
        %vm752 = vcmp.ge.s32.totalorder %v750, 0
        %vm753 = vcmp.lt.s32.totalorder %v749, 16
        %vm754 = vcmp.lt.s32.totalorder %v750, 16
        %vm755 = vmand %vm751, %vm753
        %vm756 = vmand %vm752, %vm754
        %v757 = vadd.s32 %v709, 3
        %v758 = vadd.s32 %v710, 3
        %vm759 = vcmp.ge.s32.totalorder %v757, 0
        %vm760 = vcmp.ge.s32.totalorder %v758, 0
        %vm761 = vcmp.lt.s32.totalorder %v757, 16
        %vm762 = vcmp.lt.s32.totalorder %v758, 16
        %vm763 = vmand %vm759, %vm761
        %vm764 = vmand %vm760, %vm762
        %s765 = sld [smem:[#allocation7]]
        %s766 = sld [smem:[#allocation7 + $0x1]]
        %s767 = sld [smem:[#allocation7 + $0x2]]
        %s768 = sld [smem:[#allocation7 + $0x3]]
        %s769 = sld [smem:[#allocation7 + $0x4]]
        %s770 = sld [smem:[#allocation7 + $0x5]]
        %s771 = sld [smem:[#allocation7 + $0x6]]
        %s772 = sld [smem:[#allocation7 + $0x7]]
        %s773 = sld [smem:[#allocation7 + $0x8]]
        %s774 = sld [smem:[#allocation7 + $0x9]]
        %s775 = sld [smem:[#allocation7 + $0xa]]
        %s776 = sld [smem:[#allocation7 + $0xb]]
        %s777 = sld [smem:[#allocation7 + $0xc]]
        %s778 = sld [smem:[#allocation7 + $0xd]]
        %s779 = sld [smem:[#allocation7 + $0xe]]
        %s780 = sld [smem:[#allocation7 + $0xf]]
        %s781 = sld [smem:[#allocation7 + $0x10]]
        %s782 = sld [smem:[#allocation7 + $0x11]]
        %s783 = sld [smem:[#allocation7 + $0x12]]
        %s784 = sld [smem:[#allocation7 + $0x13]]
        %s785 = sld [smem:[#allocation7 + $0x14]]
        %s786 = sld [smem:[#allocation7 + $0x15]]
        %s787 = sld [smem:[#allocation7 + $0x16]]
        %s788 = sld [smem:[#allocation7 + $0x17]]
        %s789 = sld [smem:[#allocation7 + $0x18]]
        %s790 = sld [smem:[#allocation7 + $0x19]]
        %s791 = sld [smem:[#allocation7 + $0x1a]]
        %s792 = sld [smem:[#allocation7 + $0x1b]]
        %s793 = sld [smem:[#allocation7 + $0x1c]]
        %s794 = sld [smem:[#allocation7 + $0x1d]]
        %s795 = sld [smem:[#allocation7 + $0x1e]]
        %s796 = sld [smem:[#allocation7 + $0x1f]]
        %s797 = sld [smem:[#allocation7 + $0x20]]
        %s798 = sld [smem:[#allocation7 + $0x21]]
        %s799 = sld [smem:[#allocation7 + $0x22]]
        %s800 = sld [smem:[#allocation7 + $0x23]]
        %s801 = sld [smem:[#allocation7 + $0x24]]
        %s802 = sld [smem:[#allocation7 + $0x25]]
        %s803 = sld [smem:[#allocation7 + $0x26]]
        %s804 = sld [smem:[#allocation7 + $0x27]]
        %s805 = sld [smem:[#allocation7 + $0x28]]
        %s806 = sld [smem:[#allocation7 + $0x29]]
        %s807 = sld [smem:[#allocation7 + $0x2a]]
        %s808 = sld [smem:[#allocation7 + $0x2b]]
        %s809 = sld [smem:[#allocation7 + $0x2c]]
        %s810 = sld [smem:[#allocation7 + $0x2d]]
        %s811 = sld [smem:[#allocation7 + $0x2e]]
        %s812 = sld [smem:[#allocation7 + $0x2f]]
        %s813 = sld [smem:[#allocation7 + $0x30]]
        %s814 = sld [smem:[#allocation7 + $0x31]]
        %s815 = sld [smem:[#allocation7 + $0x32]]
        %s816 = sld [smem:[#allocation7 + $0x33]]
        %s817 = sld [smem:[#allocation7 + $0x34]]
        %s818 = sld [smem:[#allocation7 + $0x35]]
        %s819 = sld [smem:[#allocation7 + $0x36]]
        %s820 = sld [smem:[#allocation7 + $0x37]]
        %s821 = sld [smem:[#allocation7 + $0x38]]
        %s822 = sld [smem:[#allocation7 + $0x39]]
        %s823 = sld [smem:[#allocation7 + $0x3a]]
        %s824 = sld [smem:[#allocation7 + $0x3b]]
        %s825 = sld [smem:[#allocation7 + $0x3c]]
        %s826 = sld [smem:[#allocation7 + $0x3d]]
        %s827 = sld [smem:[#allocation7 + $0x3e]]
        %s828 = sld [smem:[#allocation7 + $0x3f]]
        %s829 = sld [smem:[#allocation7 + $0x40]]
        %s830 = sld [smem:[#allocation7 + $0x41]]
        %s831 = sld [smem:[#allocation7 + $0x42]]
        %s832 = sld [smem:[#allocation7 + $0x43]]
        %s833 = sld [smem:[#allocation7 + $0x44]]
        %s834 = sld [smem:[#allocation7 + $0x45]]
        %s835 = sld [smem:[#allocation7 + $0x46]]
        %s836 = sld [smem:[#allocation7 + $0x47]]
        %s837 = sld [smem:[#allocation7 + $0x48]]
        %s838 = sld [smem:[#allocation7 + $0x49]]
        %s839 = sld [smem:[#allocation7 + $0x4a]]
        %s840 = sld [smem:[#allocation7 + $0x4b]]
        %s841 = sld [smem:[#allocation7 + $0x4c]]
        %s842 = sld [smem:[#allocation7 + $0x4d]]
        %s843 = sld [smem:[#allocation7 + $0x4e]]
        %s844 = sld [smem:[#allocation7 + $0x4f]]
        %s845 = sld [smem:[#allocation7 + $0x50]]
        %s846 = sld [smem:[#allocation7 + $0x51]]
        %s847 = sld [smem:[#allocation7 + $0x52]]
        %s848 = sld [smem:[#allocation7 + $0x53]]
        %s849 = sld [smem:[#allocation7 + $0x54]]
        %s850 = sld [smem:[#allocation7 + $0x55]]
        %s851 = sld [smem:[#allocation7 + $0x56]]
        %s852 = sld [smem:[#allocation7 + $0x57]]
        %s853 = sld [smem:[#allocation7 + $0x58]]
        %s854 = sld [smem:[#allocation7 + $0x59]]
        %s855 = sld [smem:[#allocation7 + $0x5a]]
        %s856 = sld [smem:[#allocation7 + $0x5b]]
        %s857 = sld [smem:[#allocation7 + $0x5c]]
        %s858 = sld [smem:[#allocation7 + $0x5d]]
        %s859 = sld [smem:[#allocation7 + $0x5e]]
        %s860 = sld [smem:[#allocation7 + $0x5f]]
        %s861 = sld [smem:[#allocation7 + $0x60]]
        %s862 = sld [smem:[#allocation7 + $0x61]]
        %s863 = sld [smem:[#allocation7 + $0x62]]
        %v864 = vld [vmem:[#allocation2] sm:$0x7]
        %v865 = vstv %s765
        %v866 = vmul.f32 %v865, %v864
        %v867 = vadd.f32 %v866, 0.0
        %v868 = vstv %s766
        %v869 = vmul.f32 %v868, %v864
        %v870 = vadd.f32 %v869, 0.0
        %v871 = vstv %s767
        %v872 = vmul.f32 %v871, %v864
        %v873 = vadd.f32 %v872, 0.0
        %v874 = vstv %s768
        %v875 = vmul.f32 %v874, %v864
        %v876 = vadd.f32 %v875, 0.0
        %v877 = vstv %s769
        %v878 = vmul.f32 %v877, %v864
        %v879 = vadd.f32 %v878, 0.0
        %v880 = vstv %s770
        %v881 = vmul.f32 %v880, %v864
        %v882 = vadd.f32 %v881, 0.0
        %v883 = vstv %s771
        %v884 = vmul.f32 %v883, %v864
        %v885 = vadd.f32 %v884, 0.0
        %v886 = vstv %s772
        %v887 = vmul.f32 %v886, %v864
        %889 = vrot.lane.b32.xlu0 %v887, 112
        %v890 = vpop.permute.xlu0 %889
        %v891 = vrot.slane %v890, 1
        %vm892 = vcmask 916480
        %v893 = vsel %vm892, %v890, %v891
        %v895 = vadd.f32 %v867, %v893
        %v896 = vstv %s773
        %v897 = vmul.f32 %v896, %v864
        %899 = vrot.lane.b32.xlu0 %v897, 112
        %v900 = vpop.permute.xlu0 %899
        %v901 = vrot.slane %v900, 1
        %v902 = vsel %vm892, %v900, %v901
        %v904 = vadd.f32 %v870, %v902
        %v905 = vstv %s774
        %v906 = vmul.f32 %v905, %v864
        %908 = vrot.lane.b32.xlu0 %v906, 112
        %v909 = vpop.permute.xlu0 %908
        %v910 = vrot.slane %v909, 1
        %v911 = vsel %vm892, %v909, %v910
        %v913 = vadd.f32 %v873, %v911
        %v914 = vstv %s775
        %v915 = vmul.f32 %v914, %v864
        %917 = vrot.lane.b32.xlu0 %v915, 112
        %v918 = vpop.permute.xlu0 %917
        %v919 = vrot.slane %v918, 1
        %v920 = vsel %vm892, %v918, %v919
        %v922 = vadd.f32 %v876, %v920
        %v923 = vstv %s776
        %v924 = vmul.f32 %v923, %v864
        %926 = vrot.lane.b32.xlu0 %v924, 112
        %v927 = vpop.permute.xlu0 %926
        %v928 = vrot.slane %v927, 1
        %v929 = vsel %vm892, %v927, %v928
        %v931 = vadd.f32 %v879, %v929
        %v932 = vstv %s777
        %v933 = vmul.f32 %v932, %v864
        %935 = vrot.lane.b32.xlu0 %v933, 112
        %v936 = vpop.permute.xlu0 %935
        %v937 = vrot.slane %v936, 1
        %v938 = vsel %vm892, %v936, %v937
        %v940 = vadd.f32 %v882, %v938
        %v941 = vstv %s778
        %v942 = vmul.f32 %v941, %v864
        %944 = vrot.lane.b32.xlu0 %v942, 112
        %v945 = vpop.permute.xlu0 %944
        %v946 = vrot.slane %v945, 1
        %v947 = vsel %vm892, %v945, %v946
        %v949 = vadd.f32 %v885, %v947
        %v950 = vstv %s779
        %v951 = vmul.f32 %v950, %v864
        %953 = vrot.lane.b32.xlu0 %v951, 96
        %v954 = vpop.permute.xlu0 %953
        %v955 = vrot.slane %v954, 1
        %vm956 = vcmask 785408
        %v957 = vsel %vm956, %v954, %v955
        %v959 = vadd.f32 %v895, %v957
        %v960 = vstv %s780
        %v961 = vmul.f32 %v960, %v864
        %963 = vrot.lane.b32.xlu0 %v961, 96
        %v964 = vpop.permute.xlu0 %963
        %v965 = vrot.slane %v964, 1
        %v966 = vsel %vm956, %v964, %v965
        %v968 = vadd.f32 %v904, %v966
        %v969 = vstv %s781
        %v970 = vmul.f32 %v969, %v864
        %972 = vrot.lane.b32.xlu0 %v970, 96
        %v973 = vpop.permute.xlu0 %972
        %v974 = vrot.slane %v973, 1
        %v975 = vsel %vm956, %v973, %v974
        %v977 = vadd.f32 %v913, %v975
        %v978 = vstv %s782
        %v979 = vmul.f32 %v978, %v864
        %981 = vrot.lane.b32.xlu0 %v979, 96
        %v982 = vpop.permute.xlu0 %981
        %v983 = vrot.slane %v982, 1
        %v984 = vsel %vm956, %v982, %v983
        %v986 = vadd.f32 %v922, %v984
        %v987 = vstv %s783
        %v988 = vmul.f32 %v987, %v864
        %990 = vrot.lane.b32.xlu0 %v988, 96
        %v991 = vpop.permute.xlu0 %990
        %v992 = vrot.slane %v991, 1
        %v993 = vsel %vm956, %v991, %v992
        %v995 = vadd.f32 %v931, %v993
        %v996 = vstv %s784
        %v997 = vmul.f32 %v996, %v864
        %999 = vrot.lane.b32.xlu0 %v997, 96
        %v1000 = vpop.permute.xlu0 %999
        %v1001 = vrot.slane %v1000, 1
        %v1002 = vsel %vm956, %v1000, %v1001
        %v1004 = vadd.f32 %v940, %v1002
        %v1005 = vstv %s785
        %v1006 = vmul.f32 %v1005, %v864
        %1008 = vrot.lane.b32.xlu0 %v1006, 96
        %v1009 = vpop.permute.xlu0 %1008
        %v1010 = vrot.slane %v1009, 1
        %v1011 = vsel %vm956, %v1009, %v1010
        %v1013 = vadd.f32 %v949, %v1011
        %v1014 = vld [vmem:[#allocation2] sm:$0xf]
        %v1015 = vstv %s786
        %v1016 = vmul.f32 %v1015, %v1014
        %1018 = vrot.lane.b32.xlu0 %v1016, 80
        %v1019 = vpop.permute.xlu0 %1018
        %v1020 = vrot.slane %v1019, 1
        %vm1021 = vcmask 654336
        %v1022 = vsel %vm1021, %v1019, %v1020
        %v1024 = vadd.f32 %v959, %v1022
        %v1025 = vstv %s787
        %v1026 = vmul.f32 %v1025, %v1014
        %1028 = vrot.lane.b32.xlu0 %v1026, 80
        %v1029 = vpop.permute.xlu0 %1028
        %v1030 = vrot.slane %v1029, 1
        %v1031 = vsel %vm1021, %v1029, %v1030
        %v1033 = vadd.f32 %v968, %v1031
        %v1034 = vstv %s788
        %v1035 = vmul.f32 %v1034, %v1014
        %1037 = vrot.lane.b32.xlu0 %v1035, 80
        %v1038 = vpop.permute.xlu0 %1037
        %v1039 = vrot.slane %v1038, 1
        %v1040 = vsel %vm1021, %v1038, %v1039
        %v1042 = vadd.f32 %v977, %v1040
        %v1043 = vstv %s789
        %v1045 = vrot.slane %v1014, 1
        %v1047 = vmul.f32 %v1043, %v1045
        %1049 = vrot.lane.b32.xlu0 %v1047, 80
        %v1050 = vpop.permute.xlu0 %1049
        %v1051 = vrot.slane %v1050, 7
        %v1052 = vsel %vm1021, %v1051, %v1050
        %v1054 = vadd.f32 %v986, %v1052
        %v1055 = vstv %s790
        %1056 = vrot.lane.b32.xlu0 %v1014, 127
        %v1057 = vpop.permute.xlu0 %1056
        %v1058 = vrot.slane %v1057, 1
        %v1059 = vrot.slane %v1057, 2
        %vm1060 = vcmask 1039360
        %v1061 = vsel %vm1060, %v1058, %v1059
        %v1063 = vmul.f32 %v1055, %v1061
        %1065 = vrot.lane.b32.xlu0 %v1063, 81
        %v1066 = vpop.permute.xlu0 %1065
        %v1067 = vrot.slane %v1066, 7
        %vm1068 = vcmask 662528
        %v1069 = vsel %vm1068, %v1067, %v1066
        %v1071 = vadd.f32 %v995, %v1069
        %v1072 = vstv %s791
        %1073 = vrot.lane.b32.xlu0 %v1014, 126
        %v1074 = vpop.permute.xlu0 %1073
        %v1075 = vrot.slane %v1074, 1
        %v1076 = vrot.slane %v1074, 2
        %vm1077 = vcmask 1031168
        %v1078 = vsel %vm1077, %v1075, %v1076
        %v1080 = vmul.f32 %v1072, %v1078
        %1082 = vrot.lane.b32.xlu0 %v1080, 82
        %v1083 = vpop.permute.xlu0 %1082
        %v1084 = vrot.slane %v1083, 7
        %vm1085 = vcmask 670720
        %v1086 = vsel %vm1085, %v1084, %v1083
        %v1088 = vadd.f32 %v1004, %v1086
        %v1089 = vstv %s792
        %1090 = vrot.lane.b32.xlu0 %v1014, 125
        %v1091 = vpop.permute.xlu0 %1090
        %v1092 = vrot.slane %v1091, 1
        %v1093 = vrot.slane %v1091, 2
        %vm1094 = vcmask 1022976
        %v1095 = vsel %vm1094, %v1092, %v1093
        %v1097 = vmul.f32 %v1089, %v1095
        %1099 = vrot.lane.b32.xlu0 %v1097, 83
        %v1100 = vpop.permute.xlu0 %1099
        %v1101 = vrot.slane %v1100, 7
        %vm1102 = vcmask 678912
        %v1103 = vsel %vm1102, %v1101, %v1100
        %v1105 = vadd.f32 %v1013, %v1103
        %v1106 = vld [vmem:[#allocation2 + $0x1] sm:$0x7]
        %v1107 = vstv %s793
        %v1108 = vmul.f32 %v1107, %v1106
        %1110 = vrot.lane.b32.xlu0 %v1108, 64
        %v1111 = vpop.permute.xlu0 %1110
        %v1112 = vrot.slane %v1111, 7
        %vm1113 = vcmask 523264
        %v1114 = vsel %vm1113, %v1112, %v1111
        %v1116 = vadd.f32 %v1024, %v1114
        %v1117 = vstv %s794
        %v1118 = vmul.f32 %v1117, %v1106
        %1120 = vrot.lane.b32.xlu0 %v1118, 64
        %v1121 = vpop.permute.xlu0 %1120
        %v1122 = vrot.slane %v1121, 7
        %v1123 = vsel %vm1113, %v1122, %v1121
        %v1125 = vadd.f32 %v1033, %v1123
        %v1126 = vstv %s795
        %v1127 = vmul.f32 %v1126, %v1106
        %1129 = vrot.lane.b32.xlu0 %v1127, 64
        %v1130 = vpop.permute.xlu0 %1129
        %v1131 = vrot.slane %v1130, 7
        %v1132 = vsel %vm1113, %v1131, %v1130
        %v1134 = vadd.f32 %v1042, %v1132
        %v1135 = vstv %s796
        %v1136 = vmul.f32 %v1135, %v1106
        %1138 = vrot.lane.b32.xlu0 %v1136, 64
        %v1139 = vpop.permute.xlu0 %1138
        %v1140 = vrot.slane %v1139, 7
        %v1141 = vsel %vm1113, %v1140, %v1139
        %v1143 = vadd.f32 %v1054, %v1141
        %v1144 = vstv %s797
        %v1145 = vmul.f32 %v1144, %v1106
        %1147 = vrot.lane.b32.xlu0 %v1145, 64
        %v1148 = vpop.permute.xlu0 %1147
        %v1149 = vrot.slane %v1148, 7
        %v1150 = vsel %vm1113, %v1149, %v1148
        %v1152 = vadd.f32 %v1071, %v1150
        %v1153 = vstv %s798
        %v1154 = vmul.f32 %v1153, %v1106
        %1156 = vrot.lane.b32.xlu0 %v1154, 64
        %v1157 = vpop.permute.xlu0 %1156
        %v1158 = vrot.slane %v1157, 7
        %v1159 = vsel %vm1113, %v1158, %v1157
        %v1161 = vadd.f32 %v1088, %v1159
        %v1162 = vstv %s799
        %v1163 = vmul.f32 %v1162, %v1106
        %1165 = vrot.lane.b32.xlu0 %v1163, 64
        %v1166 = vpop.permute.xlu0 %1165
        %v1167 = vrot.slane %v1166, 7
        %v1168 = vsel %vm1113, %v1167, %v1166
        %v1170 = vadd.f32 %v1105, %v1168
        %v1171 = vstv %s800
        %v1172 = vmul.f32 %v1171, %v1106
        %1174 = vrot.lane.b32.xlu0 %v1172, 48
        %v1175 = vpop.permute.xlu0 %1174
        %v1176 = vrot.slane %v1175, 7
        %vm1177 = vcmask 392192
        %v1178 = vsel %vm1177, %v1176, %v1175
        %v1180 = vadd.f32 %v1116, %v1178
        %v1181 = vstv %s801
        %v1182 = vmul.f32 %v1181, %v1106
        %1184 = vrot.lane.b32.xlu0 %v1182, 48
        %v1185 = vpop.permute.xlu0 %1184
        %v1186 = vrot.slane %v1185, 7
        %v1187 = vsel %vm1177, %v1186, %v1185
        %v1189 = vadd.f32 %v1125, %v1187
        %v1190 = vstv %s802
        %v1191 = vmul.f32 %v1190, %v1106
        %1193 = vrot.lane.b32.xlu0 %v1191, 48
        %v1194 = vpop.permute.xlu0 %1193
        %v1195 = vrot.slane %v1194, 7
        %v1196 = vsel %vm1177, %v1195, %v1194
        %v1198 = vadd.f32 %v1134, %v1196
        %v1199 = vstv %s803
        %v1200 = vmul.f32 %v1199, %v1106
        %1202 = vrot.lane.b32.xlu0 %v1200, 48
        %v1203 = vpop.permute.xlu0 %1202
        %v1204 = vrot.slane %v1203, 7
        %v1205 = vsel %vm1177, %v1204, %v1203
        %v1207 = vadd.f32 %v1143, %v1205
        %v1208 = vstv %s804
        %v1209 = vmul.f32 %v1208, %v1106
        %1211 = vrot.lane.b32.xlu0 %v1209, 48
        %v1212 = vpop.permute.xlu0 %1211
        %v1213 = vrot.slane %v1212, 7
        %v1214 = vsel %vm1177, %v1213, %v1212
        %v1216 = vadd.f32 %v1152, %v1214
        %v1217 = vstv %s805
        %v1218 = vmul.f32 %v1217, %v1106
        %1220 = vrot.lane.b32.xlu0 %v1218, 48
        %v1221 = vpop.permute.xlu0 %1220
        %v1222 = vrot.slane %v1221, 7
        %v1223 = vsel %vm1177, %v1222, %v1221
        %v1225 = vadd.f32 %v1161, %v1223
        %v1226 = vstv %s806
        %v1227 = vmul.f32 %v1226, %v1106
        %1229 = vrot.lane.b32.xlu0 %v1227, 48
        %v1230 = vpop.permute.xlu0 %1229
        %v1231 = vrot.slane %v1230, 7
        %v1232 = vsel %vm1177, %v1231, %v1230
        %v1234 = vadd.f32 %v1170, %v1232
        %v1235 = vstv %s807
        %v1236 = vmul.f32 %v1235, %v1106
        %1238 = vrot.lane.b32.xlu0 %v1236, 32
        %v1239 = vpop.permute.xlu0 %1238
        %v1240 = vrot.slane %v1239, 7
        %v1241 = vsel %vm387, %v1240, %v1239
        %v1243 = vadd.f32 %v1180, %v1241
        %v1244 = vstv %s808
        %v1245 = vmul.f32 %v1244, %v1106
        %1247 = vrot.lane.b32.xlu0 %v1245, 32
        %v1248 = vpop.permute.xlu0 %1247
        %v1249 = vrot.slane %v1248, 7
        %v1250 = vsel %vm387, %v1249, %v1248
        %v1252 = vadd.f32 %v1189, %v1250
        %v1253 = vstv %s809
        %v1254 = vmul.f32 %v1253, %v1106
        %1256 = vrot.lane.b32.xlu0 %v1254, 32
        %v1257 = vpop.permute.xlu0 %1256
        %v1258 = vrot.slane %v1257, 7
        %v1259 = vsel %vm387, %v1258, %v1257
        %v1261 = vadd.f32 %v1198, %v1259
        %v1262 = vstv %s810
        %v1263 = vmul.f32 %v1262, %v1106
        %1265 = vrot.lane.b32.xlu0 %v1263, 32
        %v1266 = vpop.permute.xlu0 %1265
        %v1267 = vrot.slane %v1266, 7
        %v1268 = vsel %vm387, %v1267, %v1266
        %v1270 = vadd.f32 %v1207, %v1268
        %v1271 = vstv %s811
        %v1272 = vmul.f32 %v1271, %v1106
        %1274 = vrot.lane.b32.xlu0 %v1272, 32
        %v1275 = vpop.permute.xlu0 %1274
        %v1276 = vrot.slane %v1275, 7
        %v1277 = vsel %vm387, %v1276, %v1275
        %v1279 = vadd.f32 %v1216, %v1277
        %v1280 = vstv %s812
        %v1281 = vmul.f32 %v1280, %v1106
        %1283 = vrot.lane.b32.xlu0 %v1281, 32
        %v1284 = vpop.permute.xlu0 %1283
        %v1285 = vrot.slane %v1284, 7
        %v1286 = vsel %vm387, %v1285, %v1284
        %v1288 = vadd.f32 %v1225, %v1286
        %v1289 = vstv %s813
        %v1290 = vmul.f32 %v1289, %v1106
        %1292 = vrot.lane.b32.xlu0 %v1290, 32
        %v1293 = vpop.permute.xlu0 %1292
        %v1294 = vrot.slane %v1293, 7
        %v1295 = vsel %vm387, %v1294, %v1293
        %v1297 = vadd.f32 %v1234, %v1295
        %s1298 = scalar_lea.vmem [#allocation2], 4
        %v1299 = vld [vmem:[%s1298] sm:$0x7]
        %v1300 = vstv %s814
        %v1301 = vmul.f32 %v1300, %v1299
        %v1302 = vadd.f32 %v1243, %v1301
        %v1303 = vstv %s815
        %v1304 = vmul.f32 %v1303, %v1299
        %v1305 = vadd.f32 %v1252, %v1304
        %v1306 = vstv %s816
        %v1307 = vmul.f32 %v1306, %v1299
        %v1308 = vadd.f32 %v1261, %v1307
        %v1309 = vstv %s817
        %v1310 = vmul.f32 %v1309, %v1299
        %v1311 = vadd.f32 %v1270, %v1310
        %v1312 = vstv %s818
        %v1313 = vmul.f32 %v1312, %v1299
        %v1314 = vadd.f32 %v1279, %v1313
        %v1315 = vstv %s819
        %v1316 = vmul.f32 %v1315, %v1299
        %v1317 = vadd.f32 %v1288, %v1316
        %v1318 = vstv %s820
        %v1319 = vmul.f32 %v1318, %v1299
        %v1320 = vadd.f32 %v1297, %v1319
        %v1321 = vstv %s821
        %v1322 = vmul.f32 %v1321, %v1299
        %1324 = vrot.lane.b32.xlu0 %v1322, 112
        %v1325 = vpop.permute.xlu0 %1324
        %v1326 = vrot.slane %v1325, 1
        %v1327 = vsel %vm892, %v1325, %v1326
        %v1329 = vadd.f32 %v1302, %v1327
        %v1330 = vstv %s822
        %v1331 = vmul.f32 %v1330, %v1299
        %1333 = vrot.lane.b32.xlu0 %v1331, 112
        %v1334 = vpop.permute.xlu0 %1333
        %v1335 = vrot.slane %v1334, 1
        %v1336 = vsel %vm892, %v1334, %v1335
        %v1338 = vadd.f32 %v1305, %v1336
        %v1339 = vstv %s823
        %v1340 = vmul.f32 %v1339, %v1299
        %1342 = vrot.lane.b32.xlu0 %v1340, 112
        %v1343 = vpop.permute.xlu0 %1342
        %v1344 = vrot.slane %v1343, 1
        %v1345 = vsel %vm892, %v1343, %v1344
        %v1347 = vadd.f32 %v1308, %v1345
        %v1348 = vstv %s824
        %v1349 = vmul.f32 %v1348, %v1299
        %1351 = vrot.lane.b32.xlu0 %v1349, 112
        %v1352 = vpop.permute.xlu0 %1351
        %v1353 = vrot.slane %v1352, 1
        %v1354 = vsel %vm892, %v1352, %v1353
        %v1356 = vadd.f32 %v1311, %v1354
        %v1357 = vstv %s825
        %v1358 = vmul.f32 %v1357, %v1299
        %1360 = vrot.lane.b32.xlu0 %v1358, 112
        %v1361 = vpop.permute.xlu0 %1360
        %v1362 = vrot.slane %v1361, 1
        %v1363 = vsel %vm892, %v1361, %v1362
        %v1365 = vadd.f32 %v1314, %v1363
        %v1366 = vstv %s826
        %v1367 = vmul.f32 %v1366, %v1299
        %1369 = vrot.lane.b32.xlu0 %v1367, 112
        %v1370 = vpop.permute.xlu0 %1369
        %v1371 = vrot.slane %v1370, 1
        %v1372 = vsel %vm892, %v1370, %v1371
        %v1374 = vadd.f32 %v1317, %v1372
        %v1375 = vstv %s827
        %v1376 = vmul.f32 %v1375, %v1299
        %1378 = vrot.lane.b32.xlu0 %v1376, 112
        %v1379 = vpop.permute.xlu0 %1378
        %v1380 = vrot.slane %v1379, 1
        %v1381 = vsel %vm892, %v1379, %v1380
        %v1383 = vadd.f32 %v1320, %v1381
        %v1384 = vstv %s828
        %v1385 = vmul.f32 %v1384, %v1299
        %1387 = vrot.lane.b32.xlu0 %v1385, 96
        %v1388 = vpop.permute.xlu0 %1387
        %v1389 = vrot.slane %v1388, 1
        %v1390 = vsel %vm956, %v1388, %v1389
        %v1392 = vadd.f32 %v1329, %v1390
        %v1393 = vstv %s829
        %v1394 = vmul.f32 %v1393, %v1299
        %1396 = vrot.lane.b32.xlu0 %v1394, 96
        %v1397 = vpop.permute.xlu0 %1396
        %v1398 = vrot.slane %v1397, 1
        %v1399 = vsel %vm956, %v1397, %v1398
        %v1401 = vadd.f32 %v1338, %v1399
        %v1402 = vstv %s830
        %v1403 = vmul.f32 %v1402, %v1299
        %1405 = vrot.lane.b32.xlu0 %v1403, 96
        %v1406 = vpop.permute.xlu0 %1405
        %v1407 = vrot.slane %v1406, 1
        %v1408 = vsel %vm956, %v1406, %v1407
        %v1410 = vadd.f32 %v1347, %v1408
        %v1411 = vstv %s831
        %v1412 = vmul.f32 %v1411, %v1299
        %1414 = vrot.lane.b32.xlu0 %v1412, 96
        %v1415 = vpop.permute.xlu0 %1414
        %v1416 = vrot.slane %v1415, 1
        %v1417 = vsel %vm956, %v1415, %v1416
        %v1419 = vadd.f32 %v1356, %v1417
        %v1420 = vstv %s832
        %v1421 = vmul.f32 %v1420, %v1299
        %1423 = vrot.lane.b32.xlu0 %v1421, 96
        %v1424 = vpop.permute.xlu0 %1423
        %v1425 = vrot.slane %v1424, 1
        %v1426 = vsel %vm956, %v1424, %v1425
        %v1428 = vadd.f32 %v1365, %v1426
        %v1429 = vstv %s833
        %v1430 = vmul.f32 %v1429, %v1299
        %1432 = vrot.lane.b32.xlu0 %v1430, 96
        %v1433 = vpop.permute.xlu0 %1432
        %v1434 = vrot.slane %v1433, 1
        %v1435 = vsel %vm956, %v1433, %v1434
        %v1437 = vadd.f32 %v1374, %v1435
        %v1438 = vstv %s834
        %v1439 = vmul.f32 %v1438, %v1299
        %1441 = vrot.lane.b32.xlu0 %v1439, 96
        %v1442 = vpop.permute.xlu0 %1441
        %v1443 = vrot.slane %v1442, 1
        %v1444 = vsel %vm956, %v1442, %v1443
        %v1446 = vadd.f32 %v1383, %v1444
        %v1447 = vld [vmem:[%s1298] sm:$0xf]
        %v1448 = vstv %s835
        %v1449 = vmul.f32 %v1448, %v1447
        %1451 = vrot.lane.b32.xlu0 %v1449, 80
        %v1452 = vpop.permute.xlu0 %1451
        %v1453 = vrot.slane %v1452, 1
        %v1454 = vsel %vm1021, %v1452, %v1453
        %v1456 = vadd.f32 %v1392, %v1454
        %v1457 = vstv %s836
        %v1458 = vmul.f32 %v1457, %v1447
        %1460 = vrot.lane.b32.xlu0 %v1458, 80
        %v1461 = vpop.permute.xlu0 %1460
        %v1462 = vrot.slane %v1461, 1
        %v1463 = vsel %vm1021, %v1461, %v1462
        %v1465 = vadd.f32 %v1401, %v1463
        %v1466 = vstv %s837
        %v1467 = vmul.f32 %v1466, %v1447
        %1469 = vrot.lane.b32.xlu0 %v1467, 80
        %v1470 = vpop.permute.xlu0 %1469
        %v1471 = vrot.slane %v1470, 1
        %v1472 = vsel %vm1021, %v1470, %v1471
        %v1474 = vadd.f32 %v1410, %v1472
        %v1475 = vstv %s838
        %v1477 = vrot.slane %v1447, 1
        %v1479 = vmul.f32 %v1475, %v1477
        %1481 = vrot.lane.b32.xlu0 %v1479, 80
        %v1482 = vpop.permute.xlu0 %1481
        %v1483 = vrot.slane %v1482, 7
        %v1484 = vsel %vm1021, %v1483, %v1482
        %v1486 = vadd.f32 %v1419, %v1484
        %v1487 = vstv %s839
        %1488 = vrot.lane.b32.xlu0 %v1447, 127
        %v1489 = vpop.permute.xlu0 %1488
        %v1490 = vrot.slane %v1489, 1
        %v1491 = vrot.slane %v1489, 2
        %v1492 = vsel %vm1060, %v1490, %v1491
        %v1494 = vmul.f32 %v1487, %v1492
        %1496 = vrot.lane.b32.xlu0 %v1494, 81
        %v1497 = vpop.permute.xlu0 %1496
        %v1498 = vrot.slane %v1497, 7
        %v1499 = vsel %vm1068, %v1498, %v1497
        %v1501 = vadd.f32 %v1428, %v1499
        %v1502 = vstv %s840
        %1503 = vrot.lane.b32.xlu0 %v1447, 126
        %v1504 = vpop.permute.xlu0 %1503
        %v1505 = vrot.slane %v1504, 1
        %v1506 = vrot.slane %v1504, 2
        %v1507 = vsel %vm1077, %v1505, %v1506
        %v1509 = vmul.f32 %v1502, %v1507
        %1511 = vrot.lane.b32.xlu0 %v1509, 82
        %v1512 = vpop.permute.xlu0 %1511
        %v1513 = vrot.slane %v1512, 7
        %v1514 = vsel %vm1085, %v1513, %v1512
        %v1516 = vadd.f32 %v1437, %v1514
        %v1517 = vstv %s841
        %1518 = vrot.lane.b32.xlu0 %v1447, 125
        %v1519 = vpop.permute.xlu0 %1518
        %v1520 = vrot.slane %v1519, 1
        %v1521 = vrot.slane %v1519, 2
        %v1522 = vsel %vm1094, %v1520, %v1521
        %v1524 = vmul.f32 %v1517, %v1522
        %1526 = vrot.lane.b32.xlu0 %v1524, 83
        %v1527 = vpop.permute.xlu0 %1526
        %v1528 = vrot.slane %v1527, 7
        %v1529 = vsel %vm1102, %v1528, %v1527
        %v1531 = vadd.f32 %v1446, %v1529
        %v1532 = vld [vmem:[%s1298 + $0x1] sm:$0x7]
        %v1533 = vstv %s842
        %v1534 = vmul.f32 %v1533, %v1532
        %1536 = vrot.lane.b32.xlu0 %v1534, 64
        %v1537 = vpop.permute.xlu0 %1536
        %v1538 = vrot.slane %v1537, 7
        %v1539 = vsel %vm1113, %v1538, %v1537
        %v1541 = vadd.f32 %v1456, %v1539
        %v1542 = vstv %s843
        %v1543 = vmul.f32 %v1542, %v1532
        %1545 = vrot.lane.b32.xlu0 %v1543, 64
        %v1546 = vpop.permute.xlu0 %1545
        %v1547 = vrot.slane %v1546, 7
        %v1548 = vsel %vm1113, %v1547, %v1546
        %v1550 = vadd.f32 %v1465, %v1548
        %v1551 = vstv %s844
        %v1552 = vmul.f32 %v1551, %v1532
        %1554 = vrot.lane.b32.xlu0 %v1552, 64
        %v1555 = vpop.permute.xlu0 %1554
        %v1556 = vrot.slane %v1555, 7
        %v1557 = vsel %vm1113, %v1556, %v1555
        %v1559 = vadd.f32 %v1474, %v1557
        %v1560 = vstv %s845
        %v1561 = vmul.f32 %v1560, %v1532
        %1563 = vrot.lane.b32.xlu0 %v1561, 64
        %v1564 = vpop.permute.xlu0 %1563
        %v1565 = vrot.slane %v1564, 7
        %v1566 = vsel %vm1113, %v1565, %v1564
        %v1568 = vadd.f32 %v1486, %v1566
        %v1569 = vstv %s846
        %v1570 = vmul.f32 %v1569, %v1532
        %1572 = vrot.lane.b32.xlu0 %v1570, 64
        %v1573 = vpop.permute.xlu0 %1572
        %v1574 = vrot.slane %v1573, 7
        %v1575 = vsel %vm1113, %v1574, %v1573
        %v1577 = vadd.f32 %v1501, %v1575
        %v1578 = vstv %s847
        %v1579 = vmul.f32 %v1578, %v1532
        %1581 = vrot.lane.b32.xlu0 %v1579, 64
        %v1582 = vpop.permute.xlu0 %1581
        %v1583 = vrot.slane %v1582, 7
        %v1584 = vsel %vm1113, %v1583, %v1582
        %v1586 = vadd.f32 %v1516, %v1584
        %v1587 = vstv %s848
        %v1588 = vmul.f32 %v1587, %v1532
        %1590 = vrot.lane.b32.xlu0 %v1588, 64
        %v1591 = vpop.permute.xlu0 %1590
        %v1592 = vrot.slane %v1591, 7
        %v1593 = vsel %vm1113, %v1592, %v1591
        %v1595 = vadd.f32 %v1531, %v1593
        %v1596 = vstv %s849
        %v1597 = vmul.f32 %v1596, %v1532
        %1599 = vrot.lane.b32.xlu0 %v1597, 48
        %v1600 = vpop.permute.xlu0 %1599
        %v1601 = vrot.slane %v1600, 7
        %v1602 = vsel %vm1177, %v1601, %v1600
        %v1604 = vadd.f32 %v1541, %v1602
        %v1605 = vstv %s850
        %v1606 = vmul.f32 %v1605, %v1532
        %1608 = vrot.lane.b32.xlu0 %v1606, 48
        %v1609 = vpop.permute.xlu0 %1608
        %v1610 = vrot.slane %v1609, 7
        %v1611 = vsel %vm1177, %v1610, %v1609
        %v1613 = vadd.f32 %v1550, %v1611
        %v1614 = vstv %s851
        %v1615 = vmul.f32 %v1614, %v1532
        %1617 = vrot.lane.b32.xlu0 %v1615, 48
        %v1618 = vpop.permute.xlu0 %1617
        %v1619 = vrot.slane %v1618, 7
        %v1620 = vsel %vm1177, %v1619, %v1618
        %v1622 = vadd.f32 %v1559, %v1620
        %v1623 = vstv %s852
        %v1624 = vmul.f32 %v1623, %v1532
        %1626 = vrot.lane.b32.xlu0 %v1624, 48
        %v1627 = vpop.permute.xlu0 %1626
        %v1628 = vrot.slane %v1627, 7
        %v1629 = vsel %vm1177, %v1628, %v1627
        %v1631 = vadd.f32 %v1568, %v1629
        %v1632 = vstv %s853
        %v1633 = vmul.f32 %v1632, %v1532
        %1635 = vrot.lane.b32.xlu0 %v1633, 48
        %v1636 = vpop.permute.xlu0 %1635
        %v1637 = vrot.slane %v1636, 7
        %v1638 = vsel %vm1177, %v1637, %v1636
        %v1640 = vadd.f32 %v1577, %v1638
        %v1641 = vstv %s854
        %v1642 = vmul.f32 %v1641, %v1532
        %1644 = vrot.lane.b32.xlu0 %v1642, 48
        %v1645 = vpop.permute.xlu0 %1644
        %v1646 = vrot.slane %v1645, 7
        %v1647 = vsel %vm1177, %v1646, %v1645
        %v1649 = vadd.f32 %v1586, %v1647
        %v1650 = vstv %s855
        %v1651 = vmul.f32 %v1650, %v1532
        %1653 = vrot.lane.b32.xlu0 %v1651, 48
        %v1654 = vpop.permute.xlu0 %1653
        %v1655 = vrot.slane %v1654, 7
        %v1656 = vsel %vm1177, %v1655, %v1654
        %v1658 = vadd.f32 %v1595, %v1656
        %v1659 = vstv %s856
        %v1660 = vmul.f32 %v1659, %v1532
        %1662 = vrot.lane.b32.xlu0 %v1660, 32
        %v1663 = vpop.permute.xlu0 %1662
        %v1664 = vrot.slane %v1663, 7
        %v1665 = vsel %vm387, %v1664, %v1663
        %v1667 = vadd.f32 %v1604, %v1665
        %v1668 = vstv %s857
        %v1669 = vmul.f32 %v1668, %v1532
        %1671 = vrot.lane.b32.xlu0 %v1669, 32
        %v1672 = vpop.permute.xlu0 %1671
        %v1673 = vrot.slane %v1672, 7
        %v1674 = vsel %vm387, %v1673, %v1672
        %v1676 = vadd.f32 %v1613, %v1674
        %v1677 = vstv %s858
        %v1678 = vmul.f32 %v1677, %v1532
        %1680 = vrot.lane.b32.xlu0 %v1678, 32
        %v1681 = vpop.permute.xlu0 %1680
        %v1682 = vrot.slane %v1681, 7
        %v1683 = vsel %vm387, %v1682, %v1681
        %v1685 = vadd.f32 %v1622, %v1683
        %v1686 = vstv %s859
        %v1687 = vmul.f32 %v1686, %v1532
        %1689 = vrot.lane.b32.xlu0 %v1687, 32
        %v1690 = vpop.permute.xlu0 %1689
        %v1691 = vrot.slane %v1690, 7
        %v1692 = vsel %vm387, %v1691, %v1690
        %v1694 = vadd.f32 %v1631, %v1692
        %v1695 = vstv %s860
        %v1696 = vmul.f32 %v1695, %v1532
        %1698 = vrot.lane.b32.xlu0 %v1696, 32
        %v1699 = vpop.permute.xlu0 %1698
        %v1700 = vrot.slane %v1699, 7
        %v1701 = vsel %vm387, %v1700, %v1699
        %v1703 = vadd.f32 %v1640, %v1701
        %v1704 = vstv %s861
        %v1705 = vmul.f32 %v1704, %v1532
        %1707 = vrot.lane.b32.xlu0 %v1705, 32
        %v1708 = vpop.permute.xlu0 %1707
        %v1709 = vrot.slane %v1708, 7
        %v1710 = vsel %vm387, %v1709, %v1708
        %v1712 = vadd.f32 %v1649, %v1710
        %v1713 = vstv %s862
        %v1714 = vmul.f32 %v1713, %v1532
        %1716 = vrot.lane.b32.xlu0 %v1714, 32
        %v1717 = vpop.permute.xlu0 %1716
        %v1718 = vrot.slane %v1717, 7
        %v1719 = vsel %vm387, %v1718, %v1717
        %v1721 = vadd.f32 %v1658, %v1719
        %v1722 = vstv %s863
        %v1724 = vlaneseq
        %v1725 = vshrl.u32 %v1724, 7
        %v1726 = vsub.s32 0, %v1725
        %v1727 = vrot.slane %v1667, %v1726
        %v1728 = vlaneseq
        %v1729 = vshrl.u32 %v1728, 7
        %v1730 = vsub.s32 1, %v1729
        %v1731 = vrot.slane %v1667, %v1730
        %v1732 = vlaneseq
        %v1733 = vshrl.u32 %v1732, 7
        %v1734 = vsub.s32 2, %v1733
        %v1735 = vrot.slane %v1667, %v1734
        %1736 = vrot.lane.b32.xlu0 %v1727, 51
        %v1737 = vpop.permute.xlu0 %1736
        %1738 = vrot.lane.b32.xlu0 %v1731, 51
        %v1739 = vpop.permute.xlu0 %1738
        %1740 = vrot.lane.b32.xlu0 %v1735, 51
        %v1741 = vpop.permute.xlu0 %1740
        %vm1742 = vcmask 416768
        %v1743 = vsel %vm1742, %v1737, %v1739
        %v1744 = vsel %vm1742, %v1739, %v1741
        %v1747 = vsel %vm717, %v1743, 0.0
        %v1748 = vsel %vm718, %v1744, 0.0
        %v1749 = vadd.f32 %v1722, %v1747
        %v1750 = vadd.f32 %v1722, %v1748
        %v1752 = vlaneseq
        %v1753 = vshrl.u32 %v1752, 7
        %v1754 = vsub.s32 0, %v1753
        %v1755 = vrot.slane %v1676, %v1754
        %v1756 = vlaneseq
        %v1757 = vshrl.u32 %v1756, 7
        %v1758 = vsub.s32 1, %v1757
        %v1759 = vrot.slane %v1676, %v1758
        %v1760 = vlaneseq
        %v1761 = vshrl.u32 %v1760, 7
        %v1762 = vsub.s32 2, %v1761
        %v1763 = vrot.slane %v1676, %v1762
        %1764 = vrot.lane.b32.xlu0 %v1755, 50
        %v1765 = vpop.permute.xlu0 %1764
        %1766 = vrot.lane.b32.xlu0 %v1759, 50
        %v1767 = vpop.permute.xlu0 %1766
        %1768 = vrot.lane.b32.xlu0 %v1763, 50
        %v1769 = vpop.permute.xlu0 %1768
        %vm1770 = vcmask 408576
        %v1771 = vsel %vm1770, %v1765, %v1767
        %v1772 = vsel %vm1770, %v1767, %v1769
        %v1775 = vsel %vm725, %v1771, 0.0
        %v1776 = vsel %vm726, %v1772, 0.0
        %v1777 = vadd.f32 %v1749, %v1775
        %v1778 = vadd.f32 %v1750, %v1776
        %v1780 = vlaneseq
        %v1781 = vshrl.u32 %v1780, 7
        %v1782 = vsub.s32 0, %v1781
        %v1783 = vrot.slane %v1685, %v1782
        %v1784 = vlaneseq
        %v1785 = vshrl.u32 %v1784, 7
        %v1786 = vsub.s32 1, %v1785
        %v1787 = vrot.slane %v1685, %v1786
        %v1788 = vlaneseq
        %v1789 = vshrl.u32 %v1788, 7
        %v1790 = vsub.s32 2, %v1789
        %v1791 = vrot.slane %v1685, %v1790
        %1792 = vrot.lane.b32.xlu0 %v1783, 49
        %v1793 = vpop.permute.xlu0 %1792
        %1794 = vrot.lane.b32.xlu0 %v1787, 49
        %v1795 = vpop.permute.xlu0 %1794
        %1796 = vrot.lane.b32.xlu0 %v1791, 49
        %v1797 = vpop.permute.xlu0 %1796
        %vm1798 = vcmask 400384
        %v1799 = vsel %vm1798, %v1793, %v1795
        %v1800 = vsel %vm1798, %v1795, %v1797
        %v1803 = vsel %vm733, %v1799, 0.0
        %v1804 = vsel %vm734, %v1800, 0.0
        %v1805 = vadd.f32 %v1777, %v1803
        %v1806 = vadd.f32 %v1778, %v1804
        %v1808 = vlaneseq
        %v1809 = vshrl.u32 %v1808, 7
        %v1810 = vsub.s32 0, %v1809
        %v1811 = vrot.slane %v1694, %v1810
        %v1812 = vlaneseq
        %v1813 = vshrl.u32 %v1812, 7
        %v1814 = vsub.s32 1, %v1813
        %v1815 = vrot.slane %v1694, %v1814
        %v1816 = vlaneseq
        %v1817 = vshrl.u32 %v1816, 7
        %v1818 = vsub.s32 2, %v1817
        %v1819 = vrot.slane %v1694, %v1818
        %1820 = vrot.lane.b32.xlu0 %v1811, 48
        %v1821 = vpop.permute.xlu0 %1820
        %1822 = vrot.lane.b32.xlu0 %v1815, 48
        %v1823 = vpop.permute.xlu0 %1822
        %1824 = vrot.lane.b32.xlu0 %v1819, 48
        %v1825 = vpop.permute.xlu0 %1824
        %v1826 = vsel %vm1177, %v1821, %v1823
        %v1827 = vsel %vm1177, %v1823, %v1825
        %v1830 = vsel %vm739, %v1826, 0.0
        %v1831 = vsel %vm740, %v1827, 0.0
        %v1832 = vadd.f32 %v1805, %v1830
        %v1833 = vadd.f32 %v1806, %v1831
        %v1835 = vlaneseq
        %v1836 = vshrl.u32 %v1835, 7
        %v1837 = vsub.s32 0, %v1836
        %v1838 = vrot.slane %v1703, %v1837
        %v1839 = vlaneseq
        %v1840 = vshrl.u32 %v1839, 7
        %v1841 = vsub.s32 1, %v1840
        %v1842 = vrot.slane %v1703, %v1841
        %v1843 = vlaneseq
        %v1844 = vshrl.u32 %v1843, 7
        %v1845 = vsub.s32 2, %v1844
        %v1846 = vrot.slane %v1703, %v1845
        %1847 = vrot.lane.b32.xlu0 %v1838, 47
        %v1848 = vpop.permute.xlu0 %1847
        %1849 = vrot.lane.b32.xlu0 %v1842, 47
        %v1850 = vpop.permute.xlu0 %1849
        %1851 = vrot.lane.b32.xlu0 %v1846, 47
        %v1852 = vpop.permute.xlu0 %1851
        %vm1853 = vcmask 384000
        %v1854 = vsel %vm1853, %v1848, %v1850
        %v1855 = vsel %vm1853, %v1850, %v1852
        %v1858 = vsel %vm747, %v1854, 0.0
        %v1859 = vsel %vm748, %v1855, 0.0
        %v1860 = vadd.f32 %v1832, %v1858
        %v1861 = vadd.f32 %v1833, %v1859
        %v1863 = vlaneseq
        %v1864 = vshrl.u32 %v1863, 7
        %v1865 = vsub.s32 0, %v1864
        %v1866 = vrot.slane %v1712, %v1865
        %v1867 = vlaneseq
        %v1868 = vshrl.u32 %v1867, 7
        %v1869 = vsub.s32 1, %v1868
        %v1870 = vrot.slane %v1712, %v1869
        %v1871 = vlaneseq
        %v1872 = vshrl.u32 %v1871, 7
        %v1873 = vsub.s32 2, %v1872
        %v1874 = vrot.slane %v1712, %v1873
        %1875 = vrot.lane.b32.xlu0 %v1866, 46
        %v1876 = vpop.permute.xlu0 %1875
        %1877 = vrot.lane.b32.xlu0 %v1870, 46
        %v1878 = vpop.permute.xlu0 %1877
        %1879 = vrot.lane.b32.xlu0 %v1874, 46
        %v1880 = vpop.permute.xlu0 %1879
        %vm1881 = vcmask 375808
        %v1882 = vsel %vm1881, %v1876, %v1878
        %v1883 = vsel %vm1881, %v1878, %v1880
        %v1886 = vsel %vm755, %v1882, 0.0
        %v1887 = vsel %vm756, %v1883, 0.0
        %v1888 = vadd.f32 %v1860, %v1886
        %v1889 = vadd.f32 %v1861, %v1887
        %v1891 = vlaneseq
        %v1892 = vshrl.u32 %v1891, 7
        %v1893 = vsub.s32 0, %v1892
        %v1894 = vrot.slane %v1721, %v1893
        %v1895 = vlaneseq
        %v1896 = vshrl.u32 %v1895, 7
        %v1897 = vsub.s32 1, %v1896
        %v1898 = vrot.slane %v1721, %v1897
        %v1899 = vlaneseq
        %v1900 = vshrl.u32 %v1899, 7
        %v1901 = vsub.s32 2, %v1900
        %v1902 = vrot.slane %v1721, %v1901
        %1903 = vrot.lane.b32.xlu0 %v1894, 45
        %v1904 = vpop.permute.xlu0 %1903
        %1905 = vrot.lane.b32.xlu0 %v1898, 45
        %v1906 = vpop.permute.xlu0 %1905
        %1907 = vrot.lane.b32.xlu0 %v1902, 45
        %v1908 = vpop.permute.xlu0 %1907
        %vm1909 = vcmask 367616
        %v1910 = vsel %vm1909, %v1904, %v1906
        %v1911 = vsel %vm1909, %v1906, %v1908
        %v1914 = vsel %vm763, %v1910, 0.0
        %v1915 = vsel %vm764, %v1911, 0.0
        %v1916 = vadd.f32 %v1888, %v1914
        %v1917 = vadd.f32 %v1889, %v1915
        %v1918 = vxor.u32 %v1916, 2147483648
        %v1919 = vxor.u32 %v1917, 2147483648
        %v1920 = vmul.f32 %v1918, 1.442695
        %v1921 = vpow.pop %v1920
        %v1922 = vmul.f32 %v1919, 1.442695
        %v1923 = vpow.pop %v1922
        %v1924 = vadd.f32 %v1921, 1.0
        %v1925 = vadd.f32 %v1923, 1.0
        %v1926 = vrcp.pop %v1924
        %v1927 = vmul.f32 1.0, %v1926
        %v1928 = vrcp.pop %v1925
        %v1929 = vmul.f32 1.0, %v1928
        %v1930 = vlaneseq
        %v1931 = vshrl.u32 %v1930, 7
        %v1932 = vsub.s32 0, %v1931
        %v1933 = vrot.slane %v1927, %v1932
        %v1934 = vlaneseq
        %v1935 = vshrl.u32 %v1934, 7
        %v1936 = vsub.s32 0, %v1935
        %v1937 = vrot.slane %v1929, %v1936
        %v1938 = vmul.f32 %v591, %v1933
        %v1939 = vmul.f32 %v592, %v1937
        %v1940 = vmul.f32 %v593, %v1933
        %v1941 = vmul.f32 %v594, %v1937
        %v1942 = vmul.f32 %v595, %v1933
        %v1943 = vmul.f32 %v596, %v1937
        %v1944 = vmul.f32 %v597, %v1933
        %v1945 = vmul.f32 %v598, %v1937
        %1946 = vst [vmem:[%s283] sm:$0xff] %v1938
        %1947 = vst [vmem:[%s283 + $0x8] sm:$0xff] %v1939
        %1948 = vst [vmem:[%s283 + $0x10] sm:$0xff] %v1940
        %1949 = vst [vmem:[%s283 + $0x18] sm:$0xff] %v1941
        %1950 = vst [vmem:[%s283 + $0x20] sm:$0xff] %v1942
        %1951 = vst [vmem:[%s283 + $0x28] sm:$0xff] %v1943
        %1952 = vst [vmem:[%s283 + $0x30] sm:$0xff] %v1944
        %1953 = vst [vmem:[%s283 + $0x38] sm:$0xff] %v1945
        %s1954 = sand.u32 %s163, 1
        %s1955 = scalar_lea.sflag [#allocation5], %s1954
        %s1956 = sand.u32 %s163, 1
        %s1957 = smul.addr %s1956, 64
        %s1958 = scalar_lea.vmem [#allocation8], %s1957
        // Predicated region
        $region53: #{tpu_custom_call.1} parent=43 // pred_check
          %p1959 = pneg %p173
        $region54: #{tpu_custom_call.1} parent=43 // pred_check_branch
          %1961 = sbr.rel (%p1959) target = $region56
        $region55: #{tpu_custom_call.1} parent=43 // pred_region
          %s1963 = ssub.s32 1024, 1024
          %1964 = vsyncadd %s1955, %s1963
          %s1965 = smul.addr %s24, 8
          %s1966 = smul.addr %s1965, 128
          %s1967 = scalar_lea.hbm %s6, %s1966
          %s1968 = sshll.u32 %s1958, 4
          %s1969 = int_to_ptr.vmem [resolvable:$true] %s1968
          %1974 = dma.vmem_to_hbm [thread:$0]  %s1969, 1024, %s1967, %s1955, 256, 256, 16
        $region56: #{tpu_custom_call.1} parent=43 // pred_fallthru
          _
      $region44: #{tpu_custom_call.1} parent=5 // pred_fallthru
        _
      %p1975 = scmp.le.s32.totalorder 2, %s19
      // Predicated region
      $region57: #{tpu_custom_call.1} parent=5 // pred_check
        %p1976 = pneg %p1975
      $region58: #{tpu_custom_call.1} parent=5 // pred_check_branch
        %1978 = sbr.rel (%p1976) target = $region60
      $region59: #{tpu_custom_call.1} parent=5 // pred_region
        %s1979 = ssub.s32 %s19, 2
        // Predicated region
        $region61: #{tpu_custom_call.1} parent=59 // pred_check
          %p1980 = pneg %p179
        $region62: #{tpu_custom_call.1} parent=59 // pred_check_branch
          %1982 = sbr.rel (%p1980) target = $region64
        $region63: #{tpu_custom_call.1} parent=59 // pred_region
          %s1983 = sand.u32 %s164, 1
          %s1984 = scalar_lea.sflag [#allocation5], %s1983
          %s1985 = sand.u32 %s164, 1
          %s1986 = smul.addr %s1985, 64
          %s1987 = scalar_lea.vmem [#allocation8], %s1986
          %1988 = dma.done %s1984, 1024
        $region64: #{tpu_custom_call.1} parent=59 // pred_fallthru
          _
      $region60: #{tpu_custom_call.1} parent=5 // pred_fallthru
        _
    $region6: #{tpu_custom_call.1} parent=1 // loop_footer
      %s23 = sadd.s32 1, %s19
    $region7: #{tpu_custom_call.1} parent=1 // loop_footer_branch
      %18 = sbr.rel target = $region3
    $region8: #{tpu_custom_call.1} parent=1 // loop_exit
      _
    %1989 = vsyncpa [#allocation4], 1
    %s1990 = scalar_lea.sflag [#allocation4], 1
    %1991 = vsyncpa %s1990, 1
    %1992 = vsyncpa [#allocation5], 1
    %s1993 = scalar_lea.sflag [#allocation5], 1
    %1994 = vsyncpa %s1993, 1
    %1995 = vsyncpa [#allocation6], 1
    %s1996 = scalar_lea.sflag [#allocation6], 1
    %1997 = vsyncpa %s1996, 1

</llo_original>
